<compile_context>
chip_gen: v5e
topology: v5e:2x2
jax: 0.10.0
libtpu: 0.0.40
codegen_flags: <defaults>
</compile_context>

<pallas_src>
import functools

import numpy as np
import jax
import jax.numpy as jnp
from jax import lax
from jax.experimental import pallas as pl
from jax.experimental.pallas import tpu as pltpu


def _round_up(x, m):
    return (x + m - 1) // m * m


def _make_tap_masks(img_h, img_w, n_img):
    """(8, N*H*W) f32 validity masks for the 8 non-centre 3x3 taps (SAME pad).

    Row r (dy-major order, centre tap skipped) is 1 at flattened output pixel
    p iff that pixel may read input pixel (i+dy-1, j+dx-1).  Channel-invariant;
    tiled across the batch images that live on the lane axis.
    """
    hw = img_h * img_w
    p = np.arange(hw)
    i, j = p // img_w, p % img_w
    rows = []
    for dy in range(3):
        for dx in range(3):
            if dy == 1 and dx == 1:
                continue
            di, dj = dy - 1, dx - 1
            ok = ((i + di >= 0) & (i + di < img_h) &
                  (j + dj >= 0) & (j + dj < img_w)).astype(np.float32)
            rows.append(np.tile(ok, n_img))
    return jnp.asarray(np.stack(rows))                      # (8, N*HW)


def _fused_backbone_kernel(x_ref, w_ref, b_ref, m_ref, o_ref, patches_ref, *,
                           img_w, num_layers, cp):
    """Single-step fused L x (conv3x3 SAME + ReLU) over the whole batch.

    x_ref:       (Cp, N*HW)     f32  lane-batched input activations
    w_ref:       (L, Cp, 9*Cp)  f32  im2col weight stack (VMEM-resident)
    b_ref:       (L, Cp, 1)     f32  bias stack
    m_ref:       (8, N*HW)      f32  channel-invariant boundary masks
    o_ref:       (Cp, N*HW)     f32  output activations
    patches_ref: (9*Cp, N*HW)   f32  VMEM scratch holding the im2col operand
    """
    nhw = x_ref.shape[1]
    cur = x_ref[...]                       # f32 activation carry (stays f32)
    masks = m_ref[...]                     # load once, reused by every layer

    for layer in range(num_layers):        # static L -> fully unrolled loop
        mi = 0
        for dy in range(3):
            for dx in range(3):
                k = dy * 3 + dx
                off = (dy - 1) * img_w + (dx - 1)
                if off == 0:
                    tap = cur              # centre tap: no shift, no mask
                else:
                    # tap[c, p] = cur[c, p + off], zeroed outside the image.
                    tap = (jnp.roll(cur, (-off) % nhw, axis=1)
                           * masks[mi:mi + 1, :])
                    mi += 1
                # Static sublane-aligned store into the im2col scratch.
                patches_ref[pl.ds(k * cp, cp), :] = tap

        # One MXU matmul per layer: (Cp, 9*Cp) @ (9*Cp, N*HW), f32 accumulate.
        acc = jnp.dot(w_ref[layer], patches_ref[...],
                      preferred_element_type=jnp.float32)
        cur = jnp.maximum(acc + b_ref[layer], 0.0)           # bias + ReLU

    o_ref[...] = cur


def backbone_forward(x_nchw, w_stack, b_stack):
    """Fused forward of L x (conv3x3 SAME + ReLU); NCHW in, NCHW out."""
    n_img, ch, img_h, img_w = x_nchw.shape
    num_layers, cp, k9 = w_stack.shape
    hw = img_h * img_w
    nhw = n_img * hw

    # Lane-batched, channel-padded, channels-first layout: (Cp, N*HW) f32.
    x2 = x_nchw.astype(jnp.float32).reshape(n_img, ch, hw)
    if cp != ch:
        x2 = jnp.pad(x2, ((0, 0), (0, cp - ch), (0, 0)))
    x_lane = jnp.transpose(x2, (1, 0, 2)).reshape(cp, nhw)

    masks = _make_tap_masks(img_h, img_w, n_img)             # (8, N*HW) f32

    kernel = functools.partial(_fused_backbone_kernel,
                               img_w=img_w, num_layers=num_layers, cp=cp)

    flops = 2 * num_layers * cp * k9 * nhw
    bytes_accessed = 4 * (2 * cp * nhw + int(w_stack.size) +
                          int(b_stack.size) + int(masks.size))

    out = pl.pallas_call(
        kernel,
        out_shape=jax.ShapeDtypeStruct((cp, nhw), jnp.float32),
        grid_spec=pltpu.PrefetchScalarGridSpec(
            num_scalar_prefetch=0,
            grid=(1,),                   # whole batch + all layers in one step
            in_specs=[
                pl.BlockSpec((cp, nhw), lambda i: (0, 0)),
                pl.BlockSpec((num_layers, cp, k9), lambda i: (0, 0, 0)),
                pl.BlockSpec((num_layers, cp, 1), lambda i: (0, 0, 0)),
                pl.BlockSpec((8, nhw), lambda i: (0, 0)),
            ],
            out_specs=pl.BlockSpec((cp, nhw), lambda i: (0, 0)),
            scratch_shapes=[pltpu.VMEM((9 * cp, nhw), jnp.float32)],
        ),
        compiler_params=pltpu.CompilerParams(
            dimension_semantics=("arbitrary",)),
        cost_estimate=pl.CostEstimate(flops=flops, transcendentals=0,
                                      bytes_accessed=bytes_accessed),
    )(x_lane, w_stack, b_stack, masks)

    out = out.reshape(cp, n_img, hw)
    out = jnp.transpose(out, (1, 0, 2))[:, :ch, :]
    return out.reshape(n_img, ch, img_h, img_w).astype(x_nchw.dtype)


class BackBoneBlockPallas:
    """Repeats (conv3x3 SAME + ReLU) `num` times, fused in one Pallas kernel."""

    def __init__(self, num, channels, key):
        self.params = []
        for _ in range(num):
            key, k1, k2 = jax.random.split(key, 3)
            w = jax.random.normal(k1, (3, 3, channels, channels),
                                  jnp.float32) * 0.1
            b = jax.random.normal(k2, (channels,), jnp.float32) * 0.1
            self.params.append((w, b))

        # Pack fused-kernel operands: channels padded to one sublane tile (8),
        # weights as (Cout, 9*Cin) im2col matrices (f32, MXU operands).
        cp = _round_up(channels, 8)
        wmats, biases = [], []
        for w, b in self.params:
            wt = jnp.transpose(w, (3, 0, 1, 2))              # (Co, ky, kx, Ci)
            wt = jnp.pad(wt, ((0, cp - channels), (0, 0), (0, 0),
                              (0, cp - channels)))
            wmats.append(wt.reshape(cp, 9 * cp))
            biases.append(jnp.pad(b, (0, cp - channels)))
        self.w_stack = jnp.stack(wmats)                      # (L, Cp, 9*Cp) f32
        self.b_stack = jnp.stack(biases)[:, :, None]         # (L, Cp, 1)   f32
        self._fwd = jax.jit(backbone_forward)

    def __call__(self, x_nchw):
        return self._fwd(x_nchw, self.w_stack, self.b_stack)


def _reference_forward(x_nchw, params):
    """Pure-JAX f32 reference of the same forward pass (module semantics)."""
    x = x_nchw
    for w, b in params:
        y = lax.conv_general_dilated(
            x, w, window_strides=(1, 1), padding="SAME",
            dimension_numbers=("NCHW", "HWIO", "NCHW"),
            precision=lax.Precision.HIGHEST)
        x = jnp.maximum(y + b[None, :, None, None], 0.0)
    return x


if __name__ == "__main__":
    key = jax.random.PRNGKey(0)
    kx, kp = jax.random.split(key)

    N, C, H, W = 2, 4, 16, 16
    num_blocks = 3

    x = jax.random.normal(kx, (N, C, H, W), jnp.float32)
    model = BackBoneBlockPallas(num_blocks, C, kp)

    out = jax.block_until_ready(model(x))
    ref = jax.block_until_ready(_reference_forward(x, model.params))

    assert out.shape == (N, C, H, W), "wrong output shape"
    # Everything in the kernel is f32 (only MXU-internal precision may differ
    # on hardware), so this tolerance is comfortably loose.
    assert jnp.allclose(out, ref, atol=3e-2, rtol=3e-2), "mismatch vs reference"

    print("KERNEL_OK")
</pallas_src>

<mosaic_0001>
module attributes {stable_mosaic.version = 11 : i64} {
  func.func @_fused_backbone_kernel(%arg0: i32, %arg1: memref<8x512xf32, #tpu.memory_space<vmem>>, %arg2: memref<3x8x72xf32, #tpu.memory_space<vmem>>, %arg3: memref<3x8x1xf32, #tpu.memory_space<vmem>>, %arg4: memref<8x512xf32, #tpu.memory_space<vmem>>, %arg5: memref<8x512xf32, #tpu.memory_space<vmem>>, %arg6: memref<72x512xf32, #tpu.memory_space<vmem>>) attributes {dimension_semantics = [#tpu.dimension_semantics<arbitrary>], iteration_bounds = array<i64: 1>, scalar_prefetch = 0 : i64, scratch_operands = 1 : i64, tpu.core_type = #tpu.core_type<tc>, window_params = [{pipeline_mode = #tpu.pipeline_mode<synchronous>, transform_indices = @transform_0, window_bounds = array<i64: 8, 512>}, {pipeline_mode = #tpu.pipeline_mode<synchronous>, transform_indices = @transform_1, window_bounds = array<i64: 3, 8, 72>}, {pipeline_mode = #tpu.pipeline_mode<synchronous>, transform_indices = @transform_2, window_bounds = array<i64: 3, 8, 1>}, {pipeline_mode = #tpu.pipeline_mode<synchronous>, transform_indices = @transform_3, window_bounds = array<i64: 8, 512>}, {pipeline_mode = #tpu.pipeline_mode<synchronous>, transform_indices = @transform_4, window_bounds = array<i64: 8, 512>}]} {
    %c0 = arith.constant 0 : index
    %c0_0 = arith.constant 0 : index
    %0 = vector.load %arg1[%c0, %c0_0] : memref<8x512xf32, #tpu.memory_space<vmem>>, vector<8x512xf32>
    %c0_1 = arith.constant 0 : index
    %c0_2 = arith.constant 0 : index
    %1 = vector.load %arg4[%c0_1, %c0_2] : memref<8x512xf32, #tpu.memory_space<vmem>>, vector<8x512xf32>
    %2 = vector.extract_strided_slice %0 {offsets = [0, 495], sizes = [8, 17], strides = [1, 1]} : vector<8x512xf32> to vector<8x17xf32>
    %3 = vector.extract_strided_slice %0 {offsets = [0, 0], sizes = [8, 495], strides = [1, 1]} : vector<8x512xf32> to vector<8x495xf32>
    %4 = tpu.concatenate %2, %3 in 1 : vector<8x17xf32>, vector<8x495xf32> -> vector<8x512xf32>
    %5 = vector.extract_strided_slice %1 {offsets = [0, 0], sizes = [1, 512], strides = [1, 1]} : vector<8x512xf32> to vector<1x512xf32>
    %6 = vector.broadcast %5 : vector<1x512xf32> to vector<8x512xf32>
    %7 = arith.mulf %4, %6 : vector<8x512xf32>
    %c0_3 = arith.constant 0 : index
    %c0_4 = arith.constant 0 : index
    %8 = vector.load %arg6[%c0_3, %c0_4] : memref<72x512xf32, #tpu.memory_space<vmem>>, vector<8x512xf32>
    tpu.vector_store %arg6[%c0_3, %c0_4], %7 {strides = array<i32>} : memref<72x512xf32, #tpu.memory_space<vmem>>, vector<8x512xf32>,
    %9 = vector.extract_strided_slice %0 {offsets = [0, 496], sizes = [8, 16], strides = [1, 1]} : vector<8x512xf32> to vector<8x16xf32>
    %10 = vector.extract_strided_slice %0 {offsets = [0, 0], sizes = [8, 496], strides = [1, 1]} : vector<8x512xf32> to vector<8x496xf32>
    %11 = tpu.concatenate %9, %10 in 1 : vector<8x16xf32>, vector<8x496xf32> -> vector<8x512xf32>
    %12 = vector.extract_strided_slice %1 {offsets = [1, 0], sizes = [1, 512], strides = [1, 1]} : vector<8x512xf32> to vector<1x512xf32>
    %13 = vector.broadcast %12 : vector<1x512xf32> to vector<8x512xf32>
    %14 = arith.mulf %11, %13 : vector<8x512xf32>
    %c8 = arith.constant 8 : index
    %c0_5 = arith.constant 0 : index
    %15 = vector.load %arg6[%c8, %c0_5] : memref<72x512xf32, #tpu.memory_space<vmem>>, vector<8x512xf32>
    tpu.vector_store %arg6[%c8, %c0_5], %14 {strides = array<i32>} : memref<72x512xf32, #tpu.memory_space<vmem>>, vector<8x512xf32>,
    %16 = vector.extract_strided_slice %0 {offsets = [0, 497], sizes = [8, 15], strides = [1, 1]} : vector<8x512xf32> to vector<8x15xf32>
    %17 = vector.extract_strided_slice %0 {offsets = [0, 0], sizes = [8, 497], strides = [1, 1]} : vector<8x512xf32> to vector<8x497xf32>
    %18 = tpu.concatenate %16, %17 in 1 : vector<8x15xf32>, vector<8x497xf32> -> vector<8x512xf32>
    %19 = vector.extract_strided_slice %1 {offsets = [2, 0], sizes = [1, 512], strides = [1, 1]} : vector<8x512xf32> to vector<1x512xf32>
    %20 = vector.broadcast %19 : vector<1x512xf32> to vector<8x512xf32>
    %21 = arith.mulf %18, %20 : vector<8x512xf32>
    %c16 = arith.constant 16 : index
    %c0_6 = arith.constant 0 : index
    %22 = vector.load %arg6[%c16, %c0_6] : memref<72x512xf32, #tpu.memory_space<vmem>>, vector<8x512xf32>
    tpu.vector_store %arg6[%c16, %c0_6], %21 {strides = array<i32>} : memref<72x512xf32, #tpu.memory_space<vmem>>, vector<8x512xf32>,
    %23 = vector.extract_strided_slice %0 {offsets = [0, 511], sizes = [8, 1], strides = [1, 1]} : vector<8x512xf32> to vector<8x1xf32>
    %24 = vector.extract_strided_slice %0 {offsets = [0, 0], sizes = [8, 511], strides = [1, 1]} : vector<8x512xf32> to vector<8x511xf32>
    %25 = tpu.concatenate %23, %24 in 1 : vector<8x1xf32>, vector<8x511xf32> -> vector<8x512xf32>
    %26 = vector.extract_strided_slice %1 {offsets = [3, 0], sizes = [1, 512], strides = [1, 1]} : vector<8x512xf32> to vector<1x512xf32>
    %27 = vector.broadcast %26 : vector<1x512xf32> to vector<8x512xf32>
    %28 = arith.mulf %25, %27 : vector<8x512xf32>
    %c24 = arith.constant 24 : index
    %c0_7 = arith.constant 0 : index
    %29 = vector.load %arg6[%c24, %c0_7] : memref<72x512xf32, #tpu.memory_space<vmem>>, vector<8x512xf32>
    tpu.vector_store %arg6[%c24, %c0_7], %28 {strides = array<i32>} : memref<72x512xf32, #tpu.memory_space<vmem>>, vector<8x512xf32>,
    %c32 = arith.constant 32 : index
    %c0_8 = arith.constant 0 : index
    %30 = vector.load %arg6[%c32, %c0_8] : memref<72x512xf32, #tpu.memory_space<vmem>>, vector<8x512xf32>
    tpu.vector_store %arg6[%c32, %c0_8], %0 {strides = array<i32>} : memref<72x512xf32, #tpu.memory_space<vmem>>, vector<8x512xf32>,
    %31 = vector.extract_strided_slice %0 {offsets = [0, 1], sizes = [8, 511], strides = [1, 1]} : vector<8x512xf32> to vector<8x511xf32>
    %32 = vector.extract_strided_slice %0 {offsets = [0, 0], sizes = [8, 1], strides = [1, 1]} : vector<8x512xf32> to vector<8x1xf32>
    %33 = tpu.concatenate %31, %32 in 1 : vector<8x511xf32>, vector<8x1xf32> -> vector<8x512xf32>
    %34 = vector.extract_strided_slice %1 {offsets = [4, 0], sizes = [1, 512], strides = [1, 1]} : vector<8x512xf32> to vector<1x512xf32>
    %35 = vector.broadcast %34 : vector<1x512xf32> to vector<8x512xf32>
    %36 = arith.mulf %33, %35 : vector<8x512xf32>
    %c40 = arith.constant 40 : index
    %c0_9 = arith.constant 0 : index
    %37 = vector.load %arg6[%c40, %c0_9] : memref<72x512xf32, #tpu.memory_space<vmem>>, vector<8x512xf32>
    tpu.vector_store %arg6[%c40, %c0_9], %36 {strides = array<i32>} : memref<72x512xf32, #tpu.memory_space<vmem>>, vector<8x512xf32>,
    %38 = vector.extract_strided_slice %0 {offsets = [0, 15], sizes = [8, 497], strides = [1, 1]} : vector<8x512xf32> to vector<8x497xf32>
    %39 = vector.extract_strided_slice %0 {offsets = [0, 0], sizes = [8, 15], strides = [1, 1]} : vector<8x512xf32> to vector<8x15xf32>
    %40 = tpu.concatenate %38, %39 in 1 : vector<8x497xf32>, vector<8x15xf32> -> vector<8x512xf32>
    %41 = vector.extract_strided_slice %1 {offsets = [5, 0], sizes = [1, 512], strides = [1, 1]} : vector<8x512xf32> to vector<1x512xf32>
    %42 = vector.broadcast %41 : vector<1x512xf32> to vector<8x512xf32>
    %43 = arith.mulf %40, %42 : vector<8x512xf32>
    %c48 = arith.constant 48 : index
    %c0_10 = arith.constant 0 : index
    %44 = vector.load %arg6[%c48, %c0_10] : memref<72x512xf32, #tpu.memory_space<vmem>>, vector<8x512xf32>
    tpu.vector_store %arg6[%c48, %c0_10], %43 {strides = array<i32>} : memref<72x512xf32, #tpu.memory_space<vmem>>, vector<8x512xf32>,
    %45 = vector.extract_strided_slice %0 {offsets = [0, 16], sizes = [8, 496], strides = [1, 1]} : vector<8x512xf32> to vector<8x496xf32>
    %46 = vector.extract_strided_slice %0 {offsets = [0, 0], sizes = [8, 16], strides = [1, 1]} : vector<8x512xf32> to vector<8x16xf32>
    %47 = tpu.concatenate %45, %46 in 1 : vector<8x496xf32>, vector<8x16xf32> -> vector<8x512xf32>
    %48 = vector.extract_strided_slice %1 {offsets = [6, 0], sizes = [1, 512], strides = [1, 1]} : vector<8x512xf32> to vector<1x512xf32>
    %49 = vector.broadcast %48 : vector<1x512xf32> to vector<8x512xf32>
    %50 = arith.mulf %47, %49 : vector<8x512xf32>
    %c56 = arith.constant 56 : index
    %c0_11 = arith.constant 0 : index
    %51 = vector.load %arg6[%c56, %c0_11] : memref<72x512xf32, #tpu.memory_space<vmem>>, vector<8x512xf32>
    tpu.vector_store %arg6[%c56, %c0_11], %50 {strides = array<i32>} : memref<72x512xf32, #tpu.memory_space<vmem>>, vector<8x512xf32>,
    %52 = vector.extract_strided_slice %0 {offsets = [0, 17], sizes = [8, 495], strides = [1, 1]} : vector<8x512xf32> to vector<8x495xf32>
    %53 = vector.extract_strided_slice %0 {offsets = [0, 0], sizes = [8, 17], strides = [1, 1]} : vector<8x512xf32> to vector<8x17xf32>
    %54 = tpu.concatenate %52, %53 in 1 : vector<8x495xf32>, vector<8x17xf32> -> vector<8x512xf32>
    %55 = vector.extract_strided_slice %1 {offsets = [7, 0], sizes = [1, 512], strides = [1, 1]} : vector<8x512xf32> to vector<1x512xf32>
    %56 = vector.broadcast %55 : vector<1x512xf32> to vector<8x512xf32>
    %57 = arith.mulf %54, %56 : vector<8x512xf32>
    %c64 = arith.constant 64 : index
    %c0_12 = arith.constant 0 : index
    %58 = vector.load %arg6[%c64, %c0_12] : memref<72x512xf32, #tpu.memory_space<vmem>>, vector<8x512xf32>
    tpu.vector_store %arg6[%c64, %c0_12], %57 {strides = array<i32>} : memref<72x512xf32, #tpu.memory_space<vmem>>, vector<8x512xf32>,
    %c0_13 = arith.constant 0 : index
    %c0_14 = arith.constant 0 : index
    %c0_15 = arith.constant 0 : index
    %59 = vector.load %arg2[%c0_13, %c0_14, %c0_15] : memref<3x8x72xf32, #tpu.memory_space<vmem>>, vector<1x8x72xf32>
    %60 = vector.shape_cast %59 : vector<1x8x72xf32> to vector<8x72xf32>
    %c0_16 = arith.constant 0 : index
    %c0_17 = arith.constant 0 : index
    %61 = vector.load %arg6[%c0_16, %c0_17] : memref<72x512xf32, #tpu.memory_space<vmem>>, vector<72x512xf32>
    %cst = arith.constant dense<0.000000e+00> : vector<8x512xf32>
    %62 = tpu.matmul %60, %61, %cst {dimension_numbers = #tpu.dot_dimension_numbers<[1], [0], [0], [1], [0, 0, 1, 1], [], []>} : vector<8x72xf32>, vector<72x512xf32>, vector<8x512xf32> -> vector<8x512xf32>
    %c0_18 = arith.constant 0 : index
    %c0_19 = arith.constant 0 : index
    %c0_20 = arith.constant 0 : index
    %63 = vector.load %arg3[%c0_18, %c0_19, %c0_20] : memref<3x8x1xf32, #tpu.memory_space<vmem>>, vector<1x8x1xf32>
    %64 = vector.shape_cast %63 : vector<1x8x1xf32> to vector<8x1xf32>
    %65 = vector.broadcast %64 : vector<8x1xf32> to vector<8x512xf32>
    %66 = arith.addf %62, %65 : vector<8x512xf32>
    %cst_21 = arith.constant 0.000000e+00 : f32
    %67 = vector.broadcast %cst_21 : f32 to vector<8x512xf32>
    %68 = arith.maximumf %66, %67 : vector<8x512xf32>
    %69 = vector.extract_strided_slice %68 {offsets = [0, 495], sizes = [8, 17], strides = [1, 1]} : vector<8x512xf32> to vector<8x17xf32>
    %70 = vector.extract_strided_slice %68 {offsets = [0, 0], sizes = [8, 495], strides = [1, 1]} : vector<8x512xf32> to vector<8x495xf32>
    %71 = tpu.concatenate %69, %70 in 1 : vector<8x17xf32>, vector<8x495xf32> -> vector<8x512xf32>
    %72 = vector.extract_strided_slice %1 {offsets = [0, 0], sizes = [1, 512], strides = [1, 1]} : vector<8x512xf32> to vector<1x512xf32>
    %73 = vector.broadcast %72 : vector<1x512xf32> to vector<8x512xf32>
    %74 = arith.mulf %71, %73 : vector<8x512xf32>
    %c0_22 = arith.constant 0 : index
    %c0_23 = arith.constant 0 : index
    %75 = vector.load %arg6[%c0_22, %c0_23] : memref<72x512xf32, #tpu.memory_space<vmem>>, vector<8x512xf32>
    tpu.vector_store %arg6[%c0_22, %c0_23], %74 {strides = array<i32>} : memref<72x512xf32, #tpu.memory_space<vmem>>, vector<8x512xf32>,
    %76 = vector.extract_strided_slice %68 {offsets = [0, 496], sizes = [8, 16], strides = [1, 1]} : vector<8x512xf32> to vector<8x16xf32>
    %77 = vector.extract_strided_slice %68 {offsets = [0, 0], sizes = [8, 496], strides = [1, 1]} : vector<8x512xf32> to vector<8x496xf32>
    %78 = tpu.concatenate %76, %77 in 1 : vector<8x16xf32>, vector<8x496xf32> -> vector<8x512xf32>
    %79 = vector.extract_strided_slice %1 {offsets = [1, 0], sizes = [1, 512], strides = [1, 1]} : vector<8x512xf32> to vector<1x512xf32>
    %80 = vector.broadcast %79 : vector<1x512xf32> to vector<8x512xf32>
    %81 = arith.mulf %78, %80 : vector<8x512xf32>
    %c8_24 = arith.constant 8 : index
    %c0_25 = arith.constant 0 : index
    %82 = vector.load %arg6[%c8_24, %c0_25] : memref<72x512xf32, #tpu.memory_space<vmem>>, vector<8x512xf32>
    tpu.vector_store %arg6[%c8_24, %c0_25], %81 {strides = array<i32>} : memref<72x512xf32, #tpu.memory_space<vmem>>, vector<8x512xf32>,
    %83 = vector.extract_strided_slice %68 {offsets = [0, 497], sizes = [8, 15], strides = [1, 1]} : vector<8x512xf32> to vector<8x15xf32>
    %84 = vector.extract_strided_slice %68 {offsets = [0, 0], sizes = [8, 497], strides = [1, 1]} : vector<8x512xf32> to vector<8x497xf32>
    %85 = tpu.concatenate %83, %84 in 1 : vector<8x15xf32>, vector<8x497xf32> -> vector<8x512xf32>
    %86 = vector.extract_strided_slice %1 {offsets = [2, 0], sizes = [1, 512], strides = [1, 1]} : vector<8x512xf32> to vector<1x512xf32>
    %87 = vector.broadcast %86 : vector<1x512xf32> to vector<8x512xf32>
    %88 = arith.mulf %85, %87 : vector<8x512xf32>
    %c16_26 = arith.constant 16 : index
    %c0_27 = arith.constant 0 : index
    %89 = vector.load %arg6[%c16_26, %c0_27] : memref<72x512xf32, #tpu.memory_space<vmem>>, vector<8x512xf32>
    tpu.vector_store %arg6[%c16_26, %c0_27], %88 {strides = array<i32>} : memref<72x512xf32, #tpu.memory_space<vmem>>, vector<8x512xf32>,
    %90 = vector.extract_strided_slice %68 {offsets = [0, 511], sizes = [8, 1], strides = [1, 1]} : vector<8x512xf32> to vector<8x1xf32>
    %91 = vector.extract_strided_slice %68 {offsets = [0, 0], sizes = [8, 511], strides = [1, 1]} : vector<8x512xf32> to vector<8x511xf32>
    %92 = tpu.concatenate %90, %91 in 1 : vector<8x1xf32>, vector<8x511xf32> -> vector<8x512xf32>
    %93 = vector.extract_strided_slice %1 {offsets = [3, 0], sizes = [1, 512], strides = [1, 1]} : vector<8x512xf32> to vector<1x512xf32>
    %94 = vector.broadcast %93 : vector<1x512xf32> to vector<8x512xf32>
    %95 = arith.mulf %92, %94 : vector<8x512xf32>
    %c24_28 = arith.constant 24 : index
    %c0_29 = arith.constant 0 : index
    %96 = vector.load %arg6[%c24_28, %c0_29] : memref<72x512xf32, #tpu.memory_space<vmem>>, vector<8x512xf32>
    tpu.vector_store %arg6[%c24_28, %c0_29], %95 {strides = array<i32>} : memref<72x512xf32, #tpu.memory_space<vmem>>, vector<8x512xf32>,
    %c32_30 = arith.constant 32 : index
    %c0_31 = arith.constant 0 : index
    %97 = vector.load %arg6[%c32_30, %c0_31] : memref<72x512xf32, #tpu.memory_space<vmem>>, vector<8x512xf32>
    tpu.vector_store %arg6[%c32_30, %c0_31], %68 {strides = array<i32>} : memref<72x512xf32, #tpu.memory_space<vmem>>, vector<8x512xf32>,
    %98 = vector.extract_strided_slice %68 {offsets = [0, 1], sizes = [8, 511], strides = [1, 1]} : vector<8x512xf32> to vector<8x511xf32>
    %99 = vector.extract_strided_slice %68 {offsets = [0, 0], sizes = [8, 1], strides = [1, 1]} : vector<8x512xf32> to vector<8x1xf32>
    %100 = tpu.concatenate %98, %99 in 1 : vector<8x511xf32>, vector<8x1xf32> -> vector<8x512xf32>
    %101 = vector.extract_strided_slice %1 {offsets = [4, 0], sizes = [1, 512], strides = [1, 1]} : vector<8x512xf32> to vector<1x512xf32>
    %102 = vector.broadcast %101 : vector<1x512xf32> to vector<8x512xf32>
    %103 = arith.mulf %100, %102 : vector<8x512xf32>
    %c40_32 = arith.constant 40 : index
    %c0_33 = arith.constant 0 : index
    %104 = vector.load %arg6[%c40_32, %c0_33] : memref<72x512xf32, #tpu.memory_space<vmem>>, vector<8x512xf32>
    tpu.vector_store %arg6[%c40_32, %c0_33], %103 {strides = array<i32>} : memref<72x512xf32, #tpu.memory_space<vmem>>, vector<8x512xf32>,
    %105 = vector.extract_strided_slice %68 {offsets = [0, 15], sizes = [8, 497], strides = [1, 1]} : vector<8x512xf32> to vector<8x497xf32>
    %106 = vector.extract_strided_slice %68 {offsets = [0, 0], sizes = [8, 15], strides = [1, 1]} : vector<8x512xf32> to vector<8x15xf32>
    %107 = tpu.concatenate %105, %106 in 1 : vector<8x497xf32>, vector<8x15xf32> -> vector<8x512xf32>
    %108 = vector.extract_strided_slice %1 {offsets = [5, 0], sizes = [1, 512], strides = [1, 1]} : vector<8x512xf32> to vector<1x512xf32>
    %109 = vector.broadcast %108 : vector<1x512xf32> to vector<8x512xf32>
    %110 = arith.mulf %107, %109 : vector<8x512xf32>
    %c48_34 = arith.constant 48 : index
    %c0_35 = arith.constant 0 : index
    %111 = vector.load %arg6[%c48_34, %c0_35] : memref<72x512xf32, #tpu.memory_space<vmem>>, vector<8x512xf32>
    tpu.vector_store %arg6[%c48_34, %c0_35], %110 {strides = array<i32>} : memref<72x512xf32, #tpu.memory_space<vmem>>, vector<8x512xf32>,
    %112 = vector.extract_strided_slice %68 {offsets = [0, 16], sizes = [8, 496], strides = [1, 1]} : vector<8x512xf32> to vector<8x496xf32>
    %113 = vector.extract_strided_slice %68 {offsets = [0, 0], sizes = [8, 16], strides = [1, 1]} : vector<8x512xf32> to vector<8x16xf32>
    %114 = tpu.concatenate %112, %113 in 1 : vector<8x496xf32>, vector<8x16xf32> -> vector<8x512xf32>
    %115 = vector.extract_strided_slice %1 {offsets = [6, 0], sizes = [1, 512], strides = [1, 1]} : vector<8x512xf32> to vector<1x512xf32>
    %116 = vector.broadcast %115 : vector<1x512xf32> to vector<8x512xf32>
    %117 = arith.mulf %114, %116 : vector<8x512xf32>
    %c56_36 = arith.constant 56 : index
    %c0_37 = arith.constant 0 : index
    %118 = vector.load %arg6[%c56_36, %c0_37] : memref<72x512xf32, #tpu.memory_space<vmem>>, vector<8x512xf32>
    tpu.vector_store %arg6[%c56_36, %c0_37], %117 {strides = array<i32>} : memref<72x512xf32, #tpu.memory_space<vmem>>, vector<8x512xf32>,
    %119 = vector.extract_strided_slice %68 {offsets = [0, 17], sizes = [8, 495], strides = [1, 1]} : vector<8x512xf32> to vector<8x495xf32>
    %120 = vector.extract_strided_slice %68 {offsets = [0, 0], sizes = [8, 17], strides = [1, 1]} : vector<8x512xf32> to vector<8x17xf32>
    %121 = tpu.concatenate %119, %120 in 1 : vector<8x495xf32>, vector<8x17xf32> -> vector<8x512xf32>
    %122 = vector.extract_strided_slice %1 {offsets = [7, 0], sizes = [1, 512], strides = [1, 1]} : vector<8x512xf32> to vector<1x512xf32>
    %123 = vector.broadcast %122 : vector<1x512xf32> to vector<8x512xf32>
    %124 = arith.mulf %121, %123 : vector<8x512xf32>
    %c64_38 = arith.constant 64 : index
    %c0_39 = arith.constant 0 : index
    %125 = vector.load %arg6[%c64_38, %c0_39] : memref<72x512xf32, #tpu.memory_space<vmem>>, vector<8x512xf32>
    tpu.vector_store %arg6[%c64_38, %c0_39], %124 {strides = array<i32>} : memref<72x512xf32, #tpu.memory_space<vmem>>, vector<8x512xf32>,
    %c1 = arith.constant 1 : index
    %c0_40 = arith.constant 0 : index
    %c0_41 = arith.constant 0 : index
    %126 = vector.load %arg2[%c1, %c0_40, %c0_41] : memref<3x8x72xf32, #tpu.memory_space<vmem>>, vector<1x8x72xf32>
    %127 = vector.shape_cast %126 : vector<1x8x72xf32> to vector<8x72xf32>
    %c0_42 = arith.constant 0 : index
    %c0_43 = arith.constant 0 : index
    %128 = vector.load %arg6[%c0_42, %c0_43] : memref<72x512xf32, #tpu.memory_space<vmem>>, vector<72x512xf32>
    %cst_44 = arith.constant dense<0.000000e+00> : vector<8x512xf32>
    %129 = tpu.matmul %127, %128, %cst_44 {dimension_numbers = #tpu.dot_dimension_numbers<[1], [0], [0], [1], [0, 0, 1, 1], [], []>} : vector<8x72xf32>, vector<72x512xf32>, vector<8x512xf32> -> vector<8x512xf32>
    %c1_45 = arith.constant 1 : index
    %c0_46 = arith.constant 0 : index
    %c0_47 = arith.constant 0 : index
    %130 = vector.load %arg3[%c1_45, %c0_46, %c0_47] : memref<3x8x1xf32, #tpu.memory_space<vmem>>, vector<1x8x1xf32>
    %131 = vector.shape_cast %130 : vector<1x8x1xf32> to vector<8x1xf32>
    %132 = vector.broadcast %131 : vector<8x1xf32> to vector<8x512xf32>
    %133 = arith.addf %129, %132 : vector<8x512xf32>
    %cst_48 = arith.constant 0.000000e+00 : f32
    %134 = vector.broadcast %cst_48 : f32 to vector<8x512xf32>
    %135 = arith.maximumf %133, %134 : vector<8x512xf32>
    %136 = vector.extract_strided_slice %135 {offsets = [0, 495], sizes = [8, 17], strides = [1, 1]} : vector<8x512xf32> to vector<8x17xf32>
    %137 = vector.extract_strided_slice %135 {offsets = [0, 0], sizes = [8, 495], strides = [1, 1]} : vector<8x512xf32> to vector<8x495xf32>
    %138 = tpu.concatenate %136, %137 in 1 : vector<8x17xf32>, vector<8x495xf32> -> vector<8x512xf32>
    %139 = vector.extract_strided_slice %1 {offsets = [0, 0], sizes = [1, 512], strides = [1, 1]} : vector<8x512xf32> to vector<1x512xf32>
    %140 = vector.broadcast %139 : vector<1x512xf32> to vector<8x512xf32>
    %141 = arith.mulf %138, %140 : vector<8x512xf32>
    %c0_49 = arith.constant 0 : index
    %c0_50 = arith.constant 0 : index
    %142 = vector.load %arg6[%c0_49, %c0_50] : memref<72x512xf32, #tpu.memory_space<vmem>>, vector<8x512xf32>
    tpu.vector_store %arg6[%c0_49, %c0_50], %141 {strides = array<i32>} : memref<72x512xf32, #tpu.memory_space<vmem>>, vector<8x512xf32>,
    %143 = vector.extract_strided_slice %135 {offsets = [0, 496], sizes = [8, 16], strides = [1, 1]} : vector<8x512xf32> to vector<8x16xf32>
    %144 = vector.extract_strided_slice %135 {offsets = [0, 0], sizes = [8, 496], strides = [1, 1]} : vector<8x512xf32> to vector<8x496xf32>
    %145 = tpu.concatenate %143, %144 in 1 : vector<8x16xf32>, vector<8x496xf32> -> vector<8x512xf32>
    %146 = vector.extract_strided_slice %1 {offsets = [1, 0], sizes = [1, 512], strides = [1, 1]} : vector<8x512xf32> to vector<1x512xf32>
    %147 = vector.broadcast %146 : vector<1x512xf32> to vector<8x512xf32>
    %148 = arith.mulf %145, %147 : vector<8x512xf32>
    %c8_51 = arith.constant 8 : index
    %c0_52 = arith.constant 0 : index
    %149 = vector.load %arg6[%c8_51, %c0_52] : memref<72x512xf32, #tpu.memory_space<vmem>>, vector<8x512xf32>
    tpu.vector_store %arg6[%c8_51, %c0_52], %148 {strides = array<i32>} : memref<72x512xf32, #tpu.memory_space<vmem>>, vector<8x512xf32>,
    %150 = vector.extract_strided_slice %135 {offsets = [0, 497], sizes = [8, 15], strides = [1, 1]} : vector<8x512xf32> to vector<8x15xf32>
    %151 = vector.extract_strided_slice %135 {offsets = [0, 0], sizes = [8, 497], strides = [1, 1]} : vector<8x512xf32> to vector<8x497xf32>
    %152 = tpu.concatenate %150, %151 in 1 : vector<8x15xf32>, vector<8x497xf32> -> vector<8x512xf32>
    %153 = vector.extract_strided_slice %1 {offsets = [2, 0], sizes = [1, 512], strides = [1, 1]} : vector<8x512xf32> to vector<1x512xf32>
    %154 = vector.broadcast %153 : vector<1x512xf32> to vector<8x512xf32>
    %155 = arith.mulf %152, %154 : vector<8x512xf32>
    %c16_53 = arith.constant 16 : index
    %c0_54 = arith.constant 0 : index
    %156 = vector.load %arg6[%c16_53, %c0_54] : memref<72x512xf32, #tpu.memory_space<vmem>>, vector<8x512xf32>
    tpu.vector_store %arg6[%c16_53, %c0_54], %155 {strides = array<i32>} : memref<72x512xf32, #tpu.memory_space<vmem>>, vector<8x512xf32>,
    %157 = vector.extract_strided_slice %135 {offsets = [0, 511], sizes = [8, 1], strides = [1, 1]} : vector<8x512xf32> to vector<8x1xf32>
    %158 = vector.extract_strided_slice %135 {offsets = [0, 0], sizes = [8, 511], strides = [1, 1]} : vector<8x512xf32> to vector<8x511xf32>
    %159 = tpu.concatenate %157, %158 in 1 : vector<8x1xf32>, vector<8x511xf32> -> vector<8x512xf32>
    %160 = vector.extract_strided_slice %1 {offsets = [3, 0], sizes = [1, 512], strides = [1, 1]} : vector<8x512xf32> to vector<1x512xf32>
    %161 = vector.broadcast %160 : vector<1x512xf32> to vector<8x512xf32>
    %162 = arith.mulf %159, %161 : vector<8x512xf32>
    %c24_55 = arith.constant 24 : index
    %c0_56 = arith.constant 0 : index
    %163 = vector.load %arg6[%c24_55, %c0_56] : memref<72x512xf32, #tpu.memory_space<vmem>>, vector<8x512xf32>
    tpu.vector_store %arg6[%c24_55, %c0_56], %162 {strides = array<i32>} : memref<72x512xf32, #tpu.memory_space<vmem>>, vector<8x512xf32>,
    %c32_57 = arith.constant 32 : index
    %c0_58 = arith.constant 0 : index
    %164 = vector.load %arg6[%c32_57, %c0_58] : memref<72x512xf32, #tpu.memory_space<vmem>>, vector<8x512xf32>
    tpu.vector_store %arg6[%c32_57, %c0_58], %135 {strides = array<i32>} : memref<72x512xf32, #tpu.memory_space<vmem>>, vector<8x512xf32>,
    %165 = vector.extract_strided_slice %135 {offsets = [0, 1], sizes = [8, 511], strides = [1, 1]} : vector<8x512xf32> to vector<8x511xf32>
    %166 = vector.extract_strided_slice %135 {offsets = [0, 0], sizes = [8, 1], strides = [1, 1]} : vector<8x512xf32> to vector<8x1xf32>
    %167 = tpu.concatenate %165, %166 in 1 : vector<8x511xf32>, vector<8x1xf32> -> vector<8x512xf32>
    %168 = vector.extract_strided_slice %1 {offsets = [4, 0], sizes = [1, 512], strides = [1, 1]} : vector<8x512xf32> to vector<1x512xf32>
    %169 = vector.broadcast %168 : vector<1x512xf32> to vector<8x512xf32>
    %170 = arith.mulf %167, %169 : vector<8x512xf32>
    %c40_59 = arith.constant 40 : index
    %c0_60 = arith.constant 0 : index
    %171 = vector.load %arg6[%c40_59, %c0_60] : memref<72x512xf32, #tpu.memory_space<vmem>>, vector<8x512xf32>
    tpu.vector_store %arg6[%c40_59, %c0_60], %170 {strides = array<i32>} : memref<72x512xf32, #tpu.memory_space<vmem>>, vector<8x512xf32>,
    %172 = vector.extract_strided_slice %135 {offsets = [0, 15], sizes = [8, 497], strides = [1, 1]} : vector<8x512xf32> to vector<8x497xf32>
    %173 = vector.extract_strided_slice %135 {offsets = [0, 0], sizes = [8, 15], strides = [1, 1]} : vector<8x512xf32> to vector<8x15xf32>
    %174 = tpu.concatenate %172, %173 in 1 : vector<8x497xf32>, vector<8x15xf32> -> vector<8x512xf32>
    %175 = vector.extract_strided_slice %1 {offsets = [5, 0], sizes = [1, 512], strides = [1, 1]} : vector<8x512xf32> to vector<1x512xf32>
    %176 = vector.broadcast %175 : vector<1x512xf32> to vector<8x512xf32>
    %177 = arith.mulf %174, %176 : vector<8x512xf32>
    %c48_61 = arith.constant 48 : index
    %c0_62 = arith.constant 0 : index
    %178 = vector.load %arg6[%c48_61, %c0_62] : memref<72x512xf32, #tpu.memory_space<vmem>>, vector<8x512xf32>
    tpu.vector_store %arg6[%c48_61, %c0_62], %177 {strides = array<i32>} : memref<72x512xf32, #tpu.memory_space<vmem>>, vector<8x512xf32>,
    %179 = vector.extract_strided_slice %135 {offsets = [0, 16], sizes = [8, 496], strides = [1, 1]} : vector<8x512xf32> to vector<8x496xf32>
    %180 = vector.extract_strided_slice %135 {offsets = [0, 0], sizes = [8, 16], strides = [1, 1]} : vector<8x512xf32> to vector<8x16xf32>
    %181 = tpu.concatenate %179, %180 in 1 : vector<8x496xf32>, vector<8x16xf32> -> vector<8x512xf32>
    %182 = vector.extract_strided_slice %1 {offsets = [6, 0], sizes = [1, 512], strides = [1, 1]} : vector<8x512xf32> to vector<1x512xf32>
    %183 = vector.broadcast %182 : vector<1x512xf32> to vector<8x512xf32>
    %184 = arith.mulf %181, %183 : vector<8x512xf32>
    %c56_63 = arith.constant 56 : index
    %c0_64 = arith.constant 0 : index
    %185 = vector.load %arg6[%c56_63, %c0_64] : memref<72x512xf32, #tpu.memory_space<vmem>>, vector<8x512xf32>
    tpu.vector_store %arg6[%c56_63, %c0_64], %184 {strides = array<i32>} : memref<72x512xf32, #tpu.memory_space<vmem>>, vector<8x512xf32>,
    %186 = vector.extract_strided_slice %135 {offsets = [0, 17], sizes = [8, 495], strides = [1, 1]} : vector<8x512xf32> to vector<8x495xf32>
    %187 = vector.extract_strided_slice %135 {offsets = [0, 0], sizes = [8, 17], strides = [1, 1]} : vector<8x512xf32> to vector<8x17xf32>
    %188 = tpu.concatenate %186, %187 in 1 : vector<8x495xf32>, vector<8x17xf32> -> vector<8x512xf32>
    %189 = vector.extract_strided_slice %1 {offsets = [7, 0], sizes = [1, 512], strides = [1, 1]} : vector<8x512xf32> to vector<1x512xf32>
    %190 = vector.broadcast %189 : vector<1x512xf32> to vector<8x512xf32>
    %191 = arith.mulf %188, %190 : vector<8x512xf32>
    %c64_65 = arith.constant 64 : index
    %c0_66 = arith.constant 0 : index
    %192 = vector.load %arg6[%c64_65, %c0_66] : memref<72x512xf32, #tpu.memory_space<vmem>>, vector<8x512xf32>
    tpu.vector_store %arg6[%c64_65, %c0_66], %191 {strides = array<i32>} : memref<72x512xf32, #tpu.memory_space<vmem>>, vector<8x512xf32>,
    %c2 = arith.constant 2 : index
    %c0_67 = arith.constant 0 : index
    %c0_68 = arith.constant 0 : index
    %193 = vector.load %arg2[%c2, %c0_67, %c0_68] : memref<3x8x72xf32, #tpu.memory_space<vmem>>, vector<1x8x72xf32>
    %194 = vector.shape_cast %193 : vector<1x8x72xf32> to vector<8x72xf32>
    %c0_69 = arith.constant 0 : index
    %c0_70 = arith.constant 0 : index
    %195 = vector.load %arg6[%c0_69, %c0_70] : memref<72x512xf32, #tpu.memory_space<vmem>>, vector<72x512xf32>
    %cst_71 = arith.constant dense<0.000000e+00> : vector<8x512xf32>
    %196 = tpu.matmul %194, %195, %cst_71 {dimension_numbers = #tpu.dot_dimension_numbers<[1], [0], [0], [1], [0, 0, 1, 1], [], []>} : vector<8x72xf32>, vector<72x512xf32>, vector<8x512xf32> -> vector<8x512xf32>
    %c2_72 = arith.constant 2 : index
    %c0_73 = arith.constant 0 : index
    %c0_74 = arith.constant 0 : index
    %197 = vector.load %arg3[%c2_72, %c0_73, %c0_74] : memref<3x8x1xf32, #tpu.memory_space<vmem>>, vector<1x8x1xf32>
    %198 = vector.shape_cast %197 : vector<1x8x1xf32> to vector<8x1xf32>
    %199 = vector.broadcast %198 : vector<8x1xf32> to vector<8x512xf32>
    %200 = arith.addf %196, %199 : vector<8x512xf32>
    %cst_75 = arith.constant 0.000000e+00 : f32
    %201 = vector.broadcast %cst_75 : f32 to vector<8x512xf32>
    %202 = arith.maximumf %200, %201 : vector<8x512xf32>
    %c0_76 = arith.constant 0 : index
    %c0_77 = arith.constant 0 : index
    %203 = vector.load %arg5[%c0_76, %c0_77] : memref<8x512xf32, #tpu.memory_space<vmem>>, vector<8x512xf32>
    tpu.vector_store %arg5[%c0_76, %c0_77], %202 {strides = array<i32>} : memref<8x512xf32, #tpu.memory_space<vmem>>, vector<8x512xf32>,
    return
  }
  func.func @transform_0(%arg0: i32) -> (i32, i32) {
    %c0_i32 = arith.constant 0 : i32
    %c0_i32_0 = arith.constant 0 : i32
    %c0_i32_1 = arith.constant 0 : i32
    return %c0_i32, %c0_i32_0 : i32, i32
  }
  func.func @transform_1(%arg0: i32) -> (i32, i32, i32) {
    %c0_i32 = arith.constant 0 : i32
    %c0_i32_0 = arith.constant 0 : i32
    %c0_i32_1 = arith.constant 0 : i32
    %c0_i32_2 = arith.constant 0 : i32
    return %c0_i32, %c0_i32_0, %c0_i32_1 : i32, i32, i32
  }
  func.func @transform_2(%arg0: i32) -> (i32, i32, i32) {
    %c0_i32 = arith.constant 0 : i32
    %c0_i32_0 = arith.constant 0 : i32
    %c0_i32_1 = arith.constant 0 : i32
    %c0_i32_2 = arith.constant 0 : i32
    return %c0_i32, %c0_i32_0, %c0_i32_1 : i32, i32, i32
  }
  func.func @transform_3(%arg0: i32) -> (i32, i32) {
    %c0_i32 = arith.constant 0 : i32
    %c0_i32_0 = arith.constant 0 : i32
    %c0_i32_1 = arith.constant 0 : i32
    return %c0_i32, %c0_i32_0 : i32, i32
  }
  func.func @transform_4(%arg0: i32) -> (i32, i32) {
    %c0_i32 = arith.constant 0 : i32
    %c0_i32_0 = arith.constant 0 : i32
    %c0_i32_1 = arith.constant 0 : i32
    return %c0_i32, %c0_i32_0 : i32, i32
  }
}

</mosaic_0001>

<llo_original>
// kernel: backbone_forward.1
$region0: #{backbone_forward.1}
  #allocation0 [shape = 'u32[]', space=smem, size = 0x4, offset = 0x4, fixed_abs, tag = 'smem constant byte address 0x4 - core index']
  #allocation1 [shape = 'u32[72,128]{1,0:T(1,128)}', space=vmem, size = 0x9000, scoped, tag = 'internal scratch']
  #allocation2 [shape = 'f32[72,512]{1,0:T(8,128)}', space=vmem, size = 0x24000, scoped, tag = 'scratch operand']
  %s0 = inlined_call_operand.vmem [shape: f32[8,512], index: 0, kind: input, shape index: {}]
  %s1 = inlined_call_operand.vmem [shape: f32[3,8,72], index: 1, kind: input, shape index: {}]
  %s2 = inlined_call_operand.vmem [shape: f32[3,8,1], index: 2, kind: input, shape index: {}]
  %s3 = inlined_call_operand.vmem [shape: f32[8,512], index: 3, kind: input, shape index: {}]
  %s4 = inlined_call_operand.vmem [shape: f32[8,512], index: 4, kind: output, shape index: {}]
  %s5 = sld [smem:[#allocation0]]
  $region26: #{backbone_forward.1} parent=0
    _
  %s7 = ssub.s32 1, %s5
  %s8 = scalar_select 0, %s7, %s5
  // Predicated region
  $region2: #{backbone_forward.1} parent=0 // pred_check
    _
  $region3: #{backbone_forward.1} parent=0 // pred_check_branch
    %10 = sbr.rel (0) target = $region5
  $region4: #{backbone_forward.1} parent=0 // pred_region
    _
  $region5: #{backbone_forward.1} parent=0 // pred_fallthru
    _
  // Predicated region
  $region6: #{backbone_forward.1} parent=0 // pred_check
    _
  $region7: #{backbone_forward.1} parent=0 // pred_check_branch
    %12 = sbr.rel (0) target = $region9
  $region8: #{backbone_forward.1} parent=0 // pred_region
    _
  $region9: #{backbone_forward.1} parent=0 // pred_fallthru
    _
  // Predicated region
  $region10: #{backbone_forward.1} parent=0 // pred_check
    _
  $region11: #{backbone_forward.1} parent=0 // pred_check_branch
    %14 = sbr.rel (0) target = $region13
  $region12: #{backbone_forward.1} parent=0 // pred_region
    _
  $region13: #{backbone_forward.1} parent=0 // pred_fallthru
    _
  // Predicated region
  $region14: #{backbone_forward.1} parent=0 // pred_check
    _
  $region15: #{backbone_forward.1} parent=0 // pred_check_branch
    %16 = sbr.rel (0) target = $region17
  $region16: #{backbone_forward.1} parent=0 // pred_region
    _
  $region17: #{backbone_forward.1} parent=0 // pred_fallthru
    _
  %v17 = vld [vmem:[%s0] sm:$0xff]
  %v18 = vld [vmem:[%s0 + $0x8] sm:$0xff]
  %v19 = vld [vmem:[%s0 + $0x10] sm:$0xff]
  %v20 = vld [vmem:[%s0 + $0x18] sm:$0xff]
  %v21 = vld [vmem:[%s3] sm:$0xff]
  %v22 = vld [vmem:[%s3 + $0x8] sm:$0xff]
  %v23 = vld [vmem:[%s3 + $0x10] sm:$0xff]
  %v24 = vld [vmem:[%s3 + $0x18] sm:$0xff]
  %26 = vrot.lane.b32.xlu0 %v20, 17
  %v27 = vpop.permute.xlu0 %26
  %32 = vrot.lane.b32.xlu0 %v17, 17
  %v33 = vpop.permute.xlu0 %32
  %34 = vrot.lane.b32.xlu0 %v18, 17
  %v35 = vpop.permute.xlu0 %34
  %36 = vrot.lane.b32.xlu0 %v19, 17
  %v37 = vpop.permute.xlu0 %36
  %vm38 = vcmask 138240
  %v39 = vsel %vm38, %v33, %v35
  %v40 = vsel %vm38, %v35, %v37
  %v41 = vsel %vm38, %v37, %v27
  %v46 = vsel %vm38, %v27, %v33
  %v47 = vperm.slane %v21, 0
  %v48 = vperm.slane %v22, 0
  %v49 = vperm.slane %v23, 0
  %v50 = vperm.slane %v24, 0
  %v51 = vmul.f32 %v46, %v47
  %v52 = vmul.f32 %v39, %v48
  %v53 = vmul.f32 %v40, %v49
  %v54 = vmul.f32 %v41, %v50
  %55 = vst [vmem:[#allocation2] sm:$0xff] %v51
  %56 = vst [vmem:[#allocation2 + $0x8] sm:$0xff] %v52
  %57 = vst [vmem:[#allocation2 + $0x10] sm:$0xff] %v53
  %58 = vst [vmem:[#allocation2 + $0x18] sm:$0xff] %v54
  %59 = vrot.lane.b32.xlu0 %v20, 16
  %v60 = vpop.permute.xlu0 %59
  %62 = vrot.lane.b32.xlu0 %v17, 16
  %v63 = vpop.permute.xlu0 %62
  %64 = vrot.lane.b32.xlu0 %v18, 16
  %v65 = vpop.permute.xlu0 %64
  %66 = vrot.lane.b32.xlu0 %v19, 16
  %v67 = vpop.permute.xlu0 %66
  %vm68 = vcmask 130048
  %v69 = vsel %vm68, %v63, %v65
  %v70 = vsel %vm68, %v65, %v67
  %v71 = vsel %vm68, %v67, %v60
  %v76 = vsel %vm68, %v60, %v63
  %v77 = vperm.slane %v21, 1
  %v78 = vperm.slane %v22, 1
  %v79 = vperm.slane %v23, 1
  %v80 = vperm.slane %v24, 1
  %v81 = vmul.f32 %v76, %v77
  %v82 = vmul.f32 %v69, %v78
  %v83 = vmul.f32 %v70, %v79
  %v84 = vmul.f32 %v71, %v80
  %85 = vst [vmem:[#allocation2 + $0x20] sm:$0xff] %v81
  %86 = vst [vmem:[#allocation2 + $0x28] sm:$0xff] %v82
  %87 = vst [vmem:[#allocation2 + $0x30] sm:$0xff] %v83
  %88 = vst [vmem:[#allocation2 + $0x38] sm:$0xff] %v84
  %89 = vrot.lane.b32.xlu0 %v20, 15
  %v90 = vpop.permute.xlu0 %89
  %92 = vrot.lane.b32.xlu0 %v17, 15
  %v93 = vpop.permute.xlu0 %92
  %94 = vrot.lane.b32.xlu0 %v18, 15
  %v95 = vpop.permute.xlu0 %94
  %96 = vrot.lane.b32.xlu0 %v19, 15
  %v97 = vpop.permute.xlu0 %96
  %vm98 = vcmask 121856
  %v99 = vsel %vm98, %v93, %v95
  %v100 = vsel %vm98, %v95, %v97
  %v101 = vsel %vm98, %v97, %v90
  %v106 = vsel %vm98, %v90, %v93
  %v107 = vperm.slane %v21, 2
  %v108 = vperm.slane %v22, 2
  %v109 = vperm.slane %v23, 2
  %v110 = vperm.slane %v24, 2
  %v111 = vmul.f32 %v106, %v107
  %v112 = vmul.f32 %v99, %v108
  %v113 = vmul.f32 %v100, %v109
  %v114 = vmul.f32 %v101, %v110
  %115 = vst [vmem:[#allocation2 + $0x40] sm:$0xff] %v111
  %116 = vst [vmem:[#allocation2 + $0x48] sm:$0xff] %v112
  %117 = vst [vmem:[#allocation2 + $0x50] sm:$0xff] %v113
  %118 = vst [vmem:[#allocation2 + $0x58] sm:$0xff] %v114
  %119 = vrot.lane.b32.xlu0 %v20, 1
  %v120 = vpop.permute.xlu0 %119
  %122 = vrot.lane.b32.xlu0 %v17, 1
  %v123 = vpop.permute.xlu0 %122
  %124 = vrot.lane.b32.xlu0 %v18, 1
  %v125 = vpop.permute.xlu0 %124
  %126 = vrot.lane.b32.xlu0 %v19, 1
  %v127 = vpop.permute.xlu0 %126
  %vm128 = vcmask 7168
  %v129 = vsel %vm128, %v123, %v125
  %v130 = vsel %vm128, %v125, %v127
  %v131 = vsel %vm128, %v127, %v120
  %v136 = vsel %vm128, %v120, %v123
  %v137 = vperm.slane %v21, 3
  %v138 = vperm.slane %v22, 3
  %v139 = vperm.slane %v23, 3
  %v140 = vperm.slane %v24, 3
  %v141 = vmul.f32 %v136, %v137
  %v142 = vmul.f32 %v129, %v138
  %v143 = vmul.f32 %v130, %v139
  %v144 = vmul.f32 %v131, %v140
  %145 = vst [vmem:[#allocation2 + $0x60] sm:$0xff] %v141
  %146 = vst [vmem:[#allocation2 + $0x68] sm:$0xff] %v142
  %147 = vst [vmem:[#allocation2 + $0x70] sm:$0xff] %v143
  %148 = vst [vmem:[#allocation2 + $0x78] sm:$0xff] %v144
  %149 = vst [vmem:[#allocation2 + $0x80] sm:$0xff] %v17
  %150 = vst [vmem:[#allocation2 + $0x88] sm:$0xff] %v18
  %151 = vst [vmem:[#allocation2 + $0x90] sm:$0xff] %v19
  %152 = vst [vmem:[#allocation2 + $0x98] sm:$0xff] %v20
  %153 = vrot.lane.b32.xlu0 %v17, 127
  %v154 = vpop.permute.xlu0 %153
  %155 = vrot.lane.b32.xlu0 %v18, 127
  %v156 = vpop.permute.xlu0 %155
  %157 = vrot.lane.b32.xlu0 %v19, 127
  %v158 = vpop.permute.xlu0 %157
  %159 = vrot.lane.b32.xlu0 %v20, 127
  %v160 = vpop.permute.xlu0 %159
  %vm161 = vcmask 1039360
  %v162 = vsel %vm161, %v154, %v156
  %v163 = vsel %vm161, %v156, %v158
  %v164 = vsel %vm161, %v158, %v160
  %v170 = vsel %vm161, %v160, %v154
  %v171 = vperm.slane %v21, 4
  %v172 = vperm.slane %v22, 4
  %v173 = vperm.slane %v23, 4
  %v174 = vperm.slane %v24, 4
  %v175 = vmul.f32 %v162, %v171
  %v176 = vmul.f32 %v163, %v172
  %v177 = vmul.f32 %v164, %v173
  %v178 = vmul.f32 %v170, %v174
  %179 = vst [vmem:[#allocation2 + $0xa0] sm:$0xff] %v175
  %180 = vst [vmem:[#allocation2 + $0xa8] sm:$0xff] %v176
  %181 = vst [vmem:[#allocation2 + $0xb0] sm:$0xff] %v177
  %182 = vst [vmem:[#allocation2 + $0xb8] sm:$0xff] %v178
  %183 = vrot.lane.b32.xlu0 %v17, 113
  %v184 = vpop.permute.xlu0 %183
  %185 = vrot.lane.b32.xlu0 %v18, 113
  %v186 = vpop.permute.xlu0 %185
  %187 = vrot.lane.b32.xlu0 %v19, 113
  %v188 = vpop.permute.xlu0 %187
  %189 = vrot.lane.b32.xlu0 %v20, 113
  %v190 = vpop.permute.xlu0 %189
  %vm191 = vcmask 924672
  %v192 = vsel %vm191, %v184, %v186
  %v193 = vsel %vm191, %v186, %v188
  %v194 = vsel %vm191, %v188, %v190
  %v200 = vsel %vm191, %v190, %v184
  %v201 = vperm.slane %v21, 5
  %v202 = vperm.slane %v22, 5
  %v203 = vperm.slane %v23, 5
  %v204 = vperm.slane %v24, 5
  %v205 = vmul.f32 %v192, %v201
  %v206 = vmul.f32 %v193, %v202
  %v207 = vmul.f32 %v194, %v203
  %v208 = vmul.f32 %v200, %v204
  %209 = vst [vmem:[#allocation2 + $0xc0] sm:$0xff] %v205
  %210 = vst [vmem:[#allocation2 + $0xc8] sm:$0xff] %v206
  %211 = vst [vmem:[#allocation2 + $0xd0] sm:$0xff] %v207
  %212 = vst [vmem:[#allocation2 + $0xd8] sm:$0xff] %v208
  %213 = vrot.lane.b32.xlu0 %v17, 112
  %v214 = vpop.permute.xlu0 %213
  %215 = vrot.lane.b32.xlu0 %v18, 112
  %v216 = vpop.permute.xlu0 %215
  %217 = vrot.lane.b32.xlu0 %v19, 112
  %v218 = vpop.permute.xlu0 %217
  %219 = vrot.lane.b32.xlu0 %v20, 112
  %v220 = vpop.permute.xlu0 %219
  %vm221 = vcmask 916480
  %v222 = vsel %vm221, %v214, %v216
  %v223 = vsel %vm221, %v216, %v218
  %v224 = vsel %vm221, %v218, %v220
  %v230 = vsel %vm221, %v220, %v214
  %v231 = vperm.slane %v21, 6
  %v232 = vperm.slane %v22, 6
  %v233 = vperm.slane %v23, 6
  %v234 = vperm.slane %v24, 6
  %v235 = vmul.f32 %v222, %v231
  %v236 = vmul.f32 %v223, %v232
  %v237 = vmul.f32 %v224, %v233
  %v238 = vmul.f32 %v230, %v234
  %239 = vst [vmem:[#allocation2 + $0xe0] sm:$0xff] %v235
  %240 = vst [vmem:[#allocation2 + $0xe8] sm:$0xff] %v236
  %241 = vst [vmem:[#allocation2 + $0xf0] sm:$0xff] %v237
  %242 = vst [vmem:[#allocation2 + $0xf8] sm:$0xff] %v238
  %243 = vrot.lane.b32.xlu0 %v17, 111
  %v244 = vpop.permute.xlu0 %243
  %245 = vrot.lane.b32.xlu0 %v18, 111
  %v246 = vpop.permute.xlu0 %245
  %247 = vrot.lane.b32.xlu0 %v19, 111
  %v248 = vpop.permute.xlu0 %247
  %249 = vrot.lane.b32.xlu0 %v20, 111
  %v250 = vpop.permute.xlu0 %249
  %vm251 = vcmask 908288
  %v252 = vsel %vm251, %v244, %v246
  %v253 = vsel %vm251, %v246, %v248
  %v254 = vsel %vm251, %v248, %v250
  %v260 = vsel %vm251, %v250, %v244
  %v261 = vperm.slane %v21, 7
  %v262 = vperm.slane %v22, 7
  %v263 = vperm.slane %v23, 7
  %v264 = vperm.slane %v24, 7
  %v265 = vmul.f32 %v252, %v261
  %v266 = vmul.f32 %v253, %v262
  %v267 = vmul.f32 %v254, %v263
  %v268 = vmul.f32 %v260, %v264
  %269 = vst [vmem:[#allocation2 + $0x100] sm:$0xff] %v265
  %270 = vst [vmem:[#allocation2 + $0x108] sm:$0xff] %v266
  %271 = vst [vmem:[#allocation2 + $0x110] sm:$0xff] %v267
  %272 = vst [vmem:[#allocation2 + $0x118] sm:$0xff] %v268
  %v273 = vld [vmem:[%s1] sm:$0xff]
  %v274 = vld [vmem:[#allocation2] sm:$0xff]
  %v275 = vld [vmem:[#allocation2 + $0x8] sm:$0xff]
  %v276 = vld [vmem:[#allocation2 + $0x10] sm:$0xff]
  %v277 = vld [vmem:[#allocation2 + $0x18] sm:$0xff]
  %v278 = vld [vmem:[#allocation2 + $0x20] sm:$0xff]
  %v279 = vld [vmem:[#allocation2 + $0x28] sm:$0xff]
  %v280 = vld [vmem:[#allocation2 + $0x30] sm:$0xff]
  %v281 = vld [vmem:[#allocation2 + $0x38] sm:$0xff]
  %v282 = vld [vmem:[#allocation2 + $0x40] sm:$0xff]
  %v283 = vld [vmem:[#allocation2 + $0x48] sm:$0xff]
  %v284 = vld [vmem:[#allocation2 + $0x50] sm:$0xff]
  %v285 = vld [vmem:[#allocation2 + $0x58] sm:$0xff]
  %v286 = vld [vmem:[#allocation2 + $0x60] sm:$0xff]
  %v287 = vld [vmem:[#allocation2 + $0x68] sm:$0xff]
  %v288 = vld [vmem:[#allocation2 + $0x70] sm:$0xff]
  %v289 = vld [vmem:[#allocation2 + $0x78] sm:$0xff]
  %v290 = vld [vmem:[#allocation2 + $0x80] sm:$0xff]
  %v291 = vld [vmem:[#allocation2 + $0x88] sm:$0xff]
  %v292 = vld [vmem:[#allocation2 + $0x90] sm:$0xff]
  %v293 = vld [vmem:[#allocation2 + $0x98] sm:$0xff]
  %v294 = vld [vmem:[#allocation2 + $0xa0] sm:$0xff]
  %v295 = vld [vmem:[#allocation2 + $0xa8] sm:$0xff]
  %v296 = vld [vmem:[#allocation2 + $0xb0] sm:$0xff]
  %v297 = vld [vmem:[#allocation2 + $0xb8] sm:$0xff]
  %v298 = vld [vmem:[#allocation2 + $0xc0] sm:$0xff]
  %v299 = vld [vmem:[#allocation2 + $0xc8] sm:$0xff]
  %v300 = vld [vmem:[#allocation2 + $0xd0] sm:$0xff]
  %v301 = vld [vmem:[#allocation2 + $0xd8] sm:$0xff]
  %v302 = vld [vmem:[#allocation2 + $0xe0] sm:$0xff]
  %v303 = vld [vmem:[#allocation2 + $0xe8] sm:$0xff]
  %v304 = vld [vmem:[#allocation2 + $0xf0] sm:$0xff]
  %v305 = vld [vmem:[#allocation2 + $0xf8] sm:$0xff]
  %v306 = vld [vmem:[#allocation2 + $0x100] sm:$0xff]
  %v307 = vld [vmem:[#allocation2 + $0x108] sm:$0xff]
  %v308 = vld [vmem:[#allocation2 + $0x110] sm:$0xff]
  %v309 = vld [vmem:[#allocation2 + $0x118] sm:$0xff]
  %v310 = vld [vmem:[%s2] sm:$0xff]
  %312 = vset.pattern.permute.xlu0 0
  %313 = vperm.xlu0 %312, %v310
  %v314 = vpop.permute.xlu0 %313
  %vm316 = vcmask 588800
  %v318 = vsel %vm316, %v273, 0
  %320 = vmatpush.msra.mxu0 0.0
  %321 = vmatpush.msra.mxu0 0.0
  %322 = vmatpush.msra.mxu0 0.0
  %323 = vmatpush.msra.mxu0 0.0
  %324 = vmatpush.msra.mxu0 0.0
  %325 = vmatpush.msra.mxu0 0.0
  %326 = vmatpush.msra.mxu0 0.0
  %327 = vmatpush.msra.mxu0 %v306
  %328 = vmatpush.msra.mxu0 %v302
  %329 = vmatpush.msra.mxu0 %v298
  %330 = vmatpush.msra.mxu0 %v294
  %331 = vmatpush.msra.mxu0 %v290
  %332 = vmatpush.msra.mxu0 %v286
  %333 = vmatpush.msra.mxu0 %v282
  %334 = vmatpush.msra.mxu0 %v278
  %335 = vmatpush.msra.mxu0 %v274
  %336 = vmatmul.f32.gmra.mxu0 %v318
  %v337 = vpop.f32.mrf.mxu0
  %v338 = vadd.f32 %v314, %v337
  %339 = vdwg.mxu0
  %340 = vmatpush.msra.mxu0 0.0
  %341 = vmatpush.msra.mxu0 0.0
  %342 = vmatpush.msra.mxu0 0.0
  %343 = vmatpush.msra.mxu0 0.0
  %344 = vmatpush.msra.mxu0 0.0
  %345 = vmatpush.msra.mxu0 0.0
  %346 = vmatpush.msra.mxu0 0.0
  %347 = vmatpush.msra.mxu0 %v307
  %348 = vmatpush.msra.mxu0 %v303
  %349 = vmatpush.msra.mxu0 %v299
  %350 = vmatpush.msra.mxu0 %v295
  %351 = vmatpush.msra.mxu0 %v291
  %352 = vmatpush.msra.mxu0 %v287
  %353 = vmatpush.msra.mxu0 %v283
  %354 = vmatpush.msra.mxu0 %v279
  %355 = vmatpush.msra.mxu0 %v275
  %356 = vmatmul.f32.gmra.mxu0 %v318
  %v357 = vpop.f32.mrf.mxu0
  %v358 = vadd.f32 %v314, %v357
  %359 = vdwg.mxu0
  %360 = vmatpush.msra.mxu0 0.0
  %361 = vmatpush.msra.mxu0 0.0
  %362 = vmatpush.msra.mxu0 0.0
  %363 = vmatpush.msra.mxu0 0.0
  %364 = vmatpush.msra.mxu0 0.0
  %365 = vmatpush.msra.mxu0 0.0
  %366 = vmatpush.msra.mxu0 0.0
  %367 = vmatpush.msra.mxu0 %v308
  %368 = vmatpush.msra.mxu0 %v304
  %369 = vmatpush.msra.mxu0 %v300
  %370 = vmatpush.msra.mxu0 %v296
  %371 = vmatpush.msra.mxu0 %v292
  %372 = vmatpush.msra.mxu0 %v288
  %373 = vmatpush.msra.mxu0 %v284
  %374 = vmatpush.msra.mxu0 %v280
  %375 = vmatpush.msra.mxu0 %v276
  %376 = vmatmul.f32.gmra.mxu0 %v318
  %v377 = vpop.f32.mrf.mxu0
  %v378 = vadd.f32 %v314, %v377
  %379 = vdwg.mxu0
  %380 = vmatpush.msra.mxu0 0.0
  %381 = vmatpush.msra.mxu0 0.0
  %382 = vmatpush.msra.mxu0 0.0
  %383 = vmatpush.msra.mxu0 0.0
  %384 = vmatpush.msra.mxu0 0.0
  %385 = vmatpush.msra.mxu0 0.0
  %386 = vmatpush.msra.mxu0 0.0
  %387 = vmatpush.msra.mxu0 %v309
  %388 = vmatpush.msra.mxu0 %v305
  %389 = vmatpush.msra.mxu0 %v301
  %390 = vmatpush.msra.mxu0 %v297
  %391 = vmatpush.msra.mxu0 %v293
  %392 = vmatpush.msra.mxu0 %v289
  %393 = vmatpush.msra.mxu0 %v285
  %394 = vmatpush.msra.mxu0 %v281
  %395 = vmatpush.msra.mxu0 %v277
  %396 = vmatmul.f32.gmra.mxu0 %v318
  %v397 = vpop.f32.mrf.mxu0
  %v398 = vadd.f32 %v314, %v397
  %399 = vdwg.mxu0
  %v400 = vmax.f32 %v338, 0.0
  %v401 = vmax.f32 %v358, 0.0
  %v402 = vmax.f32 %v378, 0.0
  %v403 = vmax.f32 %v398, 0.0
  %405 = vrot.lane.b32.xlu0 %v403, 17
  %v406 = vpop.permute.xlu0 %405
  %411 = vrot.lane.b32.xlu0 %v400, 17
  %v412 = vpop.permute.xlu0 %411
  %413 = vrot.lane.b32.xlu0 %v401, 17
  %v414 = vpop.permute.xlu0 %413
  %415 = vrot.lane.b32.xlu0 %v402, 17
  %v416 = vpop.permute.xlu0 %415
  %v417 = vsel %vm38, %v412, %v414
  %v418 = vsel %vm38, %v414, %v416
  %v419 = vsel %vm38, %v416, %v406
  %v424 = vsel %vm38, %v406, %v412
  %v425 = vmul.f32 %v424, %v47
  %v426 = vmul.f32 %v417, %v48
  %v427 = vmul.f32 %v418, %v49
  %v428 = vmul.f32 %v419, %v50
  %429 = vst [vmem:[#allocation2] sm:$0xff] %v425
  %430 = vst [vmem:[#allocation2 + $0x8] sm:$0xff] %v426
  %431 = vst [vmem:[#allocation2 + $0x10] sm:$0xff] %v427
  %432 = vst [vmem:[#allocation2 + $0x18] sm:$0xff] %v428
  %433 = vrot.lane.b32.xlu0 %v403, 16
  %v434 = vpop.permute.xlu0 %433
  %436 = vrot.lane.b32.xlu0 %v400, 16
  %v437 = vpop.permute.xlu0 %436
  %438 = vrot.lane.b32.xlu0 %v401, 16
  %v439 = vpop.permute.xlu0 %438
  %440 = vrot.lane.b32.xlu0 %v402, 16
  %v441 = vpop.permute.xlu0 %440
  %v442 = vsel %vm68, %v437, %v439
  %v443 = vsel %vm68, %v439, %v441
  %v444 = vsel %vm68, %v441, %v434
  %v449 = vsel %vm68, %v434, %v437
  %v450 = vmul.f32 %v449, %v77
  %v451 = vmul.f32 %v442, %v78
  %v452 = vmul.f32 %v443, %v79
  %v453 = vmul.f32 %v444, %v80
  %454 = vst [vmem:[#allocation2 + $0x20] sm:$0xff] %v450
  %455 = vst [vmem:[#allocation2 + $0x28] sm:$0xff] %v451
  %456 = vst [vmem:[#allocation2 + $0x30] sm:$0xff] %v452
  %457 = vst [vmem:[#allocation2 + $0x38] sm:$0xff] %v453
  %458 = vrot.lane.b32.xlu0 %v403, 15
  %v459 = vpop.permute.xlu0 %458
  %461 = vrot.lane.b32.xlu0 %v400, 15
  %v462 = vpop.permute.xlu0 %461
  %463 = vrot.lane.b32.xlu0 %v401, 15
  %v464 = vpop.permute.xlu0 %463
  %465 = vrot.lane.b32.xlu0 %v402, 15
  %v466 = vpop.permute.xlu0 %465
  %v467 = vsel %vm98, %v462, %v464
  %v468 = vsel %vm98, %v464, %v466
  %v469 = vsel %vm98, %v466, %v459
  %v474 = vsel %vm98, %v459, %v462
  %v475 = vmul.f32 %v474, %v107
  %v476 = vmul.f32 %v467, %v108
  %v477 = vmul.f32 %v468, %v109
  %v478 = vmul.f32 %v469, %v110
  %479 = vst [vmem:[#allocation2 + $0x40] sm:$0xff] %v475
  %480 = vst [vmem:[#allocation2 + $0x48] sm:$0xff] %v476
  %481 = vst [vmem:[#allocation2 + $0x50] sm:$0xff] %v477
  %482 = vst [vmem:[#allocation2 + $0x58] sm:$0xff] %v478
  %483 = vrot.lane.b32.xlu0 %v403, 1
  %v484 = vpop.permute.xlu0 %483
  %486 = vrot.lane.b32.xlu0 %v400, 1
  %v487 = vpop.permute.xlu0 %486
  %488 = vrot.lane.b32.xlu0 %v401, 1
  %v489 = vpop.permute.xlu0 %488
  %490 = vrot.lane.b32.xlu0 %v402, 1
  %v491 = vpop.permute.xlu0 %490
  %v492 = vsel %vm128, %v487, %v489
  %v493 = vsel %vm128, %v489, %v491
  %v494 = vsel %vm128, %v491, %v484
  %v499 = vsel %vm128, %v484, %v487
  %v500 = vmul.f32 %v499, %v137
  %v501 = vmul.f32 %v492, %v138
  %v502 = vmul.f32 %v493, %v139
  %v503 = vmul.f32 %v494, %v140
  %504 = vst [vmem:[#allocation2 + $0x60] sm:$0xff] %v500
  %505 = vst [vmem:[#allocation2 + $0x68] sm:$0xff] %v501
  %506 = vst [vmem:[#allocation2 + $0x70] sm:$0xff] %v502
  %507 = vst [vmem:[#allocation2 + $0x78] sm:$0xff] %v503
  %508 = vst [vmem:[#allocation2 + $0x80] sm:$0xff] %v400
  %509 = vst [vmem:[#allocation2 + $0x88] sm:$0xff] %v401
  %510 = vst [vmem:[#allocation2 + $0x90] sm:$0xff] %v402
  %511 = vst [vmem:[#allocation2 + $0x98] sm:$0xff] %v403
  %512 = vrot.lane.b32.xlu0 %v400, 127
  %v513 = vpop.permute.xlu0 %512
  %514 = vrot.lane.b32.xlu0 %v401, 127
  %v515 = vpop.permute.xlu0 %514
  %516 = vrot.lane.b32.xlu0 %v402, 127
  %v517 = vpop.permute.xlu0 %516
  %518 = vrot.lane.b32.xlu0 %v403, 127
  %v519 = vpop.permute.xlu0 %518
  %v520 = vsel %vm161, %v513, %v515
  %v521 = vsel %vm161, %v515, %v517
  %v522 = vsel %vm161, %v517, %v519
  %v528 = vsel %vm161, %v519, %v513
  %v529 = vmul.f32 %v520, %v171
  %v530 = vmul.f32 %v521, %v172
  %v531 = vmul.f32 %v522, %v173
  %v532 = vmul.f32 %v528, %v174
  %533 = vst [vmem:[#allocation2 + $0xa0] sm:$0xff] %v529
  %534 = vst [vmem:[#allocation2 + $0xa8] sm:$0xff] %v530
  %535 = vst [vmem:[#allocation2 + $0xb0] sm:$0xff] %v531
  %536 = vst [vmem:[#allocation2 + $0xb8] sm:$0xff] %v532
  %537 = vrot.lane.b32.xlu0 %v400, 113
  %v538 = vpop.permute.xlu0 %537
  %539 = vrot.lane.b32.xlu0 %v401, 113
  %v540 = vpop.permute.xlu0 %539
  %541 = vrot.lane.b32.xlu0 %v402, 113
  %v542 = vpop.permute.xlu0 %541
  %543 = vrot.lane.b32.xlu0 %v403, 113
  %v544 = vpop.permute.xlu0 %543
  %v545 = vsel %vm191, %v538, %v540
  %v546 = vsel %vm191, %v540, %v542
  %v547 = vsel %vm191, %v542, %v544
  %v553 = vsel %vm191, %v544, %v538
  %v554 = vmul.f32 %v545, %v201
  %v555 = vmul.f32 %v546, %v202
  %v556 = vmul.f32 %v547, %v203
  %v557 = vmul.f32 %v553, %v204
  %558 = vst [vmem:[#allocation2 + $0xc0] sm:$0xff] %v554
  %559 = vst [vmem:[#allocation2 + $0xc8] sm:$0xff] %v555
  %560 = vst [vmem:[#allocation2 + $0xd0] sm:$0xff] %v556
  %561 = vst [vmem:[#allocation2 + $0xd8] sm:$0xff] %v557
  %562 = vrot.lane.b32.xlu0 %v400, 112
  %v563 = vpop.permute.xlu0 %562
  %564 = vrot.lane.b32.xlu0 %v401, 112
  %v565 = vpop.permute.xlu0 %564
  %566 = vrot.lane.b32.xlu0 %v402, 112
  %v567 = vpop.permute.xlu0 %566
  %568 = vrot.lane.b32.xlu0 %v403, 112
  %v569 = vpop.permute.xlu0 %568
  %v570 = vsel %vm221, %v563, %v565
  %v571 = vsel %vm221, %v565, %v567
  %v572 = vsel %vm221, %v567, %v569
  %v578 = vsel %vm221, %v569, %v563
  %v579 = vmul.f32 %v570, %v231
  %v580 = vmul.f32 %v571, %v232
  %v581 = vmul.f32 %v572, %v233
  %v582 = vmul.f32 %v578, %v234
  %583 = vst [vmem:[#allocation2 + $0xe0] sm:$0xff] %v579
  %584 = vst [vmem:[#allocation2 + $0xe8] sm:$0xff] %v580
  %585 = vst [vmem:[#allocation2 + $0xf0] sm:$0xff] %v581
  %586 = vst [vmem:[#allocation2 + $0xf8] sm:$0xff] %v582
  %587 = vrot.lane.b32.xlu0 %v400, 111
  %v588 = vpop.permute.xlu0 %587
  %589 = vrot.lane.b32.xlu0 %v401, 111
  %v590 = vpop.permute.xlu0 %589
  %591 = vrot.lane.b32.xlu0 %v402, 111
  %v592 = vpop.permute.xlu0 %591
  %593 = vrot.lane.b32.xlu0 %v403, 111
  %v594 = vpop.permute.xlu0 %593
  %v595 = vsel %vm251, %v588, %v590
  %v596 = vsel %vm251, %v590, %v592
  %v597 = vsel %vm251, %v592, %v594
  %v603 = vsel %vm251, %v594, %v588
  %v604 = vmul.f32 %v595, %v261
  %v605 = vmul.f32 %v596, %v262
  %v606 = vmul.f32 %v597, %v263
  %v607 = vmul.f32 %v603, %v264
  %608 = vst [vmem:[#allocation2 + $0x100] sm:$0xff] %v604
  %609 = vst [vmem:[#allocation2 + $0x108] sm:$0xff] %v605
  %610 = vst [vmem:[#allocation2 + $0x110] sm:$0xff] %v606
  %611 = vst [vmem:[#allocation2 + $0x118] sm:$0xff] %v607
  %s612 = scalar_lea.vmem %s1, 8
  %v613 = vld [vmem:[%s612] sm:$0xff]
  %v614 = vld [vmem:[#allocation2] sm:$0xff]
  %v615 = vld [vmem:[#allocation2 + $0x8] sm:$0xff]
  %v616 = vld [vmem:[#allocation2 + $0x10] sm:$0xff]
  %v617 = vld [vmem:[#allocation2 + $0x18] sm:$0xff]
  %v618 = vld [vmem:[#allocation2 + $0x20] sm:$0xff]
  %v619 = vld [vmem:[#allocation2 + $0x28] sm:$0xff]
  %v620 = vld [vmem:[#allocation2 + $0x30] sm:$0xff]
  %v621 = vld [vmem:[#allocation2 + $0x38] sm:$0xff]
  %v622 = vld [vmem:[#allocation2 + $0x40] sm:$0xff]
  %v623 = vld [vmem:[#allocation2 + $0x48] sm:$0xff]
  %v624 = vld [vmem:[#allocation2 + $0x50] sm:$0xff]
  %v625 = vld [vmem:[#allocation2 + $0x58] sm:$0xff]
  %v626 = vld [vmem:[#allocation2 + $0x60] sm:$0xff]
  %v627 = vld [vmem:[#allocation2 + $0x68] sm:$0xff]
  %v628 = vld [vmem:[#allocation2 + $0x70] sm:$0xff]
  %v629 = vld [vmem:[#allocation2 + $0x78] sm:$0xff]
  %v630 = vld [vmem:[#allocation2 + $0x80] sm:$0xff]
  %v631 = vld [vmem:[#allocation2 + $0x88] sm:$0xff]
  %v632 = vld [vmem:[#allocation2 + $0x90] sm:$0xff]
  %v633 = vld [vmem:[#allocation2 + $0x98] sm:$0xff]
  %v634 = vld [vmem:[#allocation2 + $0xa0] sm:$0xff]
  %v635 = vld [vmem:[#allocation2 + $0xa8] sm:$0xff]
  %v636 = vld [vmem:[#allocation2 + $0xb0] sm:$0xff]
  %v637 = vld [vmem:[#allocation2 + $0xb8] sm:$0xff]
  %v638 = vld [vmem:[#allocation2 + $0xc0] sm:$0xff]
  %v639 = vld [vmem:[#allocation2 + $0xc8] sm:$0xff]
  %v640 = vld [vmem:[#allocation2 + $0xd0] sm:$0xff]
  %v641 = vld [vmem:[#allocation2 + $0xd8] sm:$0xff]
  %v642 = vld [vmem:[#allocation2 + $0xe0] sm:$0xff]
  %v643 = vld [vmem:[#allocation2 + $0xe8] sm:$0xff]
  %v644 = vld [vmem:[#allocation2 + $0xf0] sm:$0xff]
  %v645 = vld [vmem:[#allocation2 + $0xf8] sm:$0xff]
  %v646 = vld [vmem:[#allocation2 + $0x100] sm:$0xff]
  %v647 = vld [vmem:[#allocation2 + $0x108] sm:$0xff]
  %v648 = vld [vmem:[#allocation2 + $0x110] sm:$0xff]
  %v649 = vld [vmem:[#allocation2 + $0x118] sm:$0xff]
  %s650 = scalar_lea.vmem %s2, 8
  %v651 = vld [vmem:[%s650] sm:$0xff]
  %653 = vset.pattern.permute.xlu0 0
  %654 = vperm.xlu0 %653, %v651
  %v655 = vpop.permute.xlu0 %654
  %v658 = vsel %vm316, %v613, 0
  %660 = vmatpush.msra.mxu0 0.0
  %661 = vmatpush.msra.mxu0 0.0
  %662 = vmatpush.msra.mxu0 0.0
  %663 = vmatpush.msra.mxu0 0.0
  %664 = vmatpush.msra.mxu0 0.0
  %665 = vmatpush.msra.mxu0 0.0
  %666 = vmatpush.msra.mxu0 0.0
  %667 = vmatpush.msra.mxu0 %v646
  %668 = vmatpush.msra.mxu0 %v642
  %669 = vmatpush.msra.mxu0 %v638
  %670 = vmatpush.msra.mxu0 %v634
  %671 = vmatpush.msra.mxu0 %v630
  %672 = vmatpush.msra.mxu0 %v626
  %673 = vmatpush.msra.mxu0 %v622
  %674 = vmatpush.msra.mxu0 %v618
  %675 = vmatpush.msra.mxu0 %v614
  %676 = vmatmul.f32.gmra.mxu0 %v658
  %v677 = vpop.f32.mrf.mxu0
  %v678 = vadd.f32 %v655, %v677
  %679 = vdwg.mxu0
  %680 = vmatpush.msra.mxu0 0.0
  %681 = vmatpush.msra.mxu0 0.0
  %682 = vmatpush.msra.mxu0 0.0
  %683 = vmatpush.msra.mxu0 0.0
  %684 = vmatpush.msra.mxu0 0.0
  %685 = vmatpush.msra.mxu0 0.0
  %686 = vmatpush.msra.mxu0 0.0
  %687 = vmatpush.msra.mxu0 %v647
  %688 = vmatpush.msra.mxu0 %v643
  %689 = vmatpush.msra.mxu0 %v639
  %690 = vmatpush.msra.mxu0 %v635
  %691 = vmatpush.msra.mxu0 %v631
  %692 = vmatpush.msra.mxu0 %v627
  %693 = vmatpush.msra.mxu0 %v623
  %694 = vmatpush.msra.mxu0 %v619
  %695 = vmatpush.msra.mxu0 %v615
  %696 = vmatmul.f32.gmra.mxu0 %v658
  %v697 = vpop.f32.mrf.mxu0
  %v698 = vadd.f32 %v655, %v697
  %699 = vdwg.mxu0
  %700 = vmatpush.msra.mxu0 0.0
  %701 = vmatpush.msra.mxu0 0.0
  %702 = vmatpush.msra.mxu0 0.0
  %703 = vmatpush.msra.mxu0 0.0
  %704 = vmatpush.msra.mxu0 0.0
  %705 = vmatpush.msra.mxu0 0.0
  %706 = vmatpush.msra.mxu0 0.0
  %707 = vmatpush.msra.mxu0 %v648
  %708 = vmatpush.msra.mxu0 %v644
  %709 = vmatpush.msra.mxu0 %v640
  %710 = vmatpush.msra.mxu0 %v636
  %711 = vmatpush.msra.mxu0 %v632
  %712 = vmatpush.msra.mxu0 %v628
  %713 = vmatpush.msra.mxu0 %v624
  %714 = vmatpush.msra.mxu0 %v620
  %715 = vmatpush.msra.mxu0 %v616
  %716 = vmatmul.f32.gmra.mxu0 %v658
  %v717 = vpop.f32.mrf.mxu0
  %v718 = vadd.f32 %v655, %v717
  %719 = vdwg.mxu0
  %720 = vmatpush.msra.mxu0 0.0
  %721 = vmatpush.msra.mxu0 0.0
  %722 = vmatpush.msra.mxu0 0.0
  %723 = vmatpush.msra.mxu0 0.0
  %724 = vmatpush.msra.mxu0 0.0
  %725 = vmatpush.msra.mxu0 0.0
  %726 = vmatpush.msra.mxu0 0.0
  %727 = vmatpush.msra.mxu0 %v649
  %728 = vmatpush.msra.mxu0 %v645
  %729 = vmatpush.msra.mxu0 %v641
  %730 = vmatpush.msra.mxu0 %v637
  %731 = vmatpush.msra.mxu0 %v633
  %732 = vmatpush.msra.mxu0 %v629
  %733 = vmatpush.msra.mxu0 %v625
  %734 = vmatpush.msra.mxu0 %v621
  %735 = vmatpush.msra.mxu0 %v617
  %736 = vmatmul.f32.gmra.mxu0 %v658
  %v737 = vpop.f32.mrf.mxu0
  %v738 = vadd.f32 %v655, %v737
  %739 = vdwg.mxu0
  %v740 = vmax.f32 %v678, 0.0
  %v741 = vmax.f32 %v698, 0.0
  %v742 = vmax.f32 %v718, 0.0
  %v743 = vmax.f32 %v738, 0.0
  %745 = vrot.lane.b32.xlu0 %v743, 17
  %v746 = vpop.permute.xlu0 %745
  %751 = vrot.lane.b32.xlu0 %v740, 17
  %v752 = vpop.permute.xlu0 %751
  %753 = vrot.lane.b32.xlu0 %v741, 17
  %v754 = vpop.permute.xlu0 %753
  %755 = vrot.lane.b32.xlu0 %v742, 17
  %v756 = vpop.permute.xlu0 %755
  %v757 = vsel %vm38, %v752, %v754
  %v758 = vsel %vm38, %v754, %v756
  %v759 = vsel %vm38, %v756, %v746
  %v764 = vsel %vm38, %v746, %v752
  %v765 = vmul.f32 %v764, %v47
  %v766 = vmul.f32 %v757, %v48
  %v767 = vmul.f32 %v758, %v49
  %v768 = vmul.f32 %v759, %v50
  %769 = vst [vmem:[#allocation2] sm:$0xff] %v765
  %770 = vst [vmem:[#allocation2 + $0x8] sm:$0xff] %v766
  %771 = vst [vmem:[#allocation2 + $0x10] sm:$0xff] %v767
  %772 = vst [vmem:[#allocation2 + $0x18] sm:$0xff] %v768
  %773 = vrot.lane.b32.xlu0 %v743, 16
  %v774 = vpop.permute.xlu0 %773
  %776 = vrot.lane.b32.xlu0 %v740, 16
  %v777 = vpop.permute.xlu0 %776
  %778 = vrot.lane.b32.xlu0 %v741, 16
  %v779 = vpop.permute.xlu0 %778
  %780 = vrot.lane.b32.xlu0 %v742, 16
  %v781 = vpop.permute.xlu0 %780
  %v782 = vsel %vm68, %v777, %v779
  %v783 = vsel %vm68, %v779, %v781
  %v784 = vsel %vm68, %v781, %v774
  %v789 = vsel %vm68, %v774, %v777
  %v790 = vmul.f32 %v789, %v77
  %v791 = vmul.f32 %v782, %v78
  %v792 = vmul.f32 %v783, %v79
  %v793 = vmul.f32 %v784, %v80
  %794 = vst [vmem:[#allocation2 + $0x20] sm:$0xff] %v790
  %795 = vst [vmem:[#allocation2 + $0x28] sm:$0xff] %v791
  %796 = vst [vmem:[#allocation2 + $0x30] sm:$0xff] %v792
  %797 = vst [vmem:[#allocation2 + $0x38] sm:$0xff] %v793
  %798 = vrot.lane.b32.xlu0 %v743, 15
  %v799 = vpop.permute.xlu0 %798
  %801 = vrot.lane.b32.xlu0 %v740, 15
  %v802 = vpop.permute.xlu0 %801
  %803 = vrot.lane.b32.xlu0 %v741, 15
  %v804 = vpop.permute.xlu0 %803
  %805 = vrot.lane.b32.xlu0 %v742, 15
  %v806 = vpop.permute.xlu0 %805
  %v807 = vsel %vm98, %v802, %v804
  %v808 = vsel %vm98, %v804, %v806
  %v809 = vsel %vm98, %v806, %v799
  %v814 = vsel %vm98, %v799, %v802
  %v815 = vmul.f32 %v814, %v107
  %v816 = vmul.f32 %v807, %v108
  %v817 = vmul.f32 %v808, %v109
  %v818 = vmul.f32 %v809, %v110
  %819 = vst [vmem:[#allocation2 + $0x40] sm:$0xff] %v815
  %820 = vst [vmem:[#allocation2 + $0x48] sm:$0xff] %v816
  %821 = vst [vmem:[#allocation2 + $0x50] sm:$0xff] %v817
  %822 = vst [vmem:[#allocation2 + $0x58] sm:$0xff] %v818
  %823 = vrot.lane.b32.xlu0 %v743, 1
  %v824 = vpop.permute.xlu0 %823
  %826 = vrot.lane.b32.xlu0 %v740, 1
  %v827 = vpop.permute.xlu0 %826
  %828 = vrot.lane.b32.xlu0 %v741, 1
  %v829 = vpop.permute.xlu0 %828
  %830 = vrot.lane.b32.xlu0 %v742, 1
  %v831 = vpop.permute.xlu0 %830
  %v832 = vsel %vm128, %v827, %v829
  %v833 = vsel %vm128, %v829, %v831
  %v834 = vsel %vm128, %v831, %v824
  %v839 = vsel %vm128, %v824, %v827
  %v840 = vmul.f32 %v839, %v137
  %v841 = vmul.f32 %v832, %v138
  %v842 = vmul.f32 %v833, %v139
  %v843 = vmul.f32 %v834, %v140
  %844 = vst [vmem:[#allocation2 + $0x60] sm:$0xff] %v840
  %845 = vst [vmem:[#allocation2 + $0x68] sm:$0xff] %v841
  %846 = vst [vmem:[#allocation2 + $0x70] sm:$0xff] %v842
  %847 = vst [vmem:[#allocation2 + $0x78] sm:$0xff] %v843
  %848 = vst [vmem:[#allocation2 + $0x80] sm:$0xff] %v740
  %849 = vst [vmem:[#allocation2 + $0x88] sm:$0xff] %v741
  %850 = vst [vmem:[#allocation2 + $0x90] sm:$0xff] %v742
  %851 = vst [vmem:[#allocation2 + $0x98] sm:$0xff] %v743
  %852 = vrot.lane.b32.xlu0 %v740, 127
  %v853 = vpop.permute.xlu0 %852
  %854 = vrot.lane.b32.xlu0 %v741, 127
  %v855 = vpop.permute.xlu0 %854
  %856 = vrot.lane.b32.xlu0 %v742, 127
  %v857 = vpop.permute.xlu0 %856
  %858 = vrot.lane.b32.xlu0 %v743, 127
  %v859 = vpop.permute.xlu0 %858
  %v860 = vsel %vm161, %v853, %v855
  %v861 = vsel %vm161, %v855, %v857
  %v862 = vsel %vm161, %v857, %v859
  %v868 = vsel %vm161, %v859, %v853
  %v869 = vmul.f32 %v860, %v171
  %v870 = vmul.f32 %v861, %v172
  %v871 = vmul.f32 %v862, %v173
  %v872 = vmul.f32 %v868, %v174
  %873 = vst [vmem:[#allocation2 + $0xa0] sm:$0xff] %v869
  %874 = vst [vmem:[#allocation2 + $0xa8] sm:$0xff] %v870
  %875 = vst [vmem:[#allocation2 + $0xb0] sm:$0xff] %v871
  %876 = vst [vmem:[#allocation2 + $0xb8] sm:$0xff] %v872
  %877 = vrot.lane.b32.xlu0 %v740, 113
  %v878 = vpop.permute.xlu0 %877
  %879 = vrot.lane.b32.xlu0 %v741, 113
  %v880 = vpop.permute.xlu0 %879
  %881 = vrot.lane.b32.xlu0 %v742, 113
  %v882 = vpop.permute.xlu0 %881
  %883 = vrot.lane.b32.xlu0 %v743, 113
  %v884 = vpop.permute.xlu0 %883
  %v885 = vsel %vm191, %v878, %v880
  %v886 = vsel %vm191, %v880, %v882
  %v887 = vsel %vm191, %v882, %v884
  %v893 = vsel %vm191, %v884, %v878
  %v894 = vmul.f32 %v885, %v201
  %v895 = vmul.f32 %v886, %v202
  %v896 = vmul.f32 %v887, %v203
  %v897 = vmul.f32 %v893, %v204
  %898 = vst [vmem:[#allocation2 + $0xc0] sm:$0xff] %v894
  %899 = vst [vmem:[#allocation2 + $0xc8] sm:$0xff] %v895
  %900 = vst [vmem:[#allocation2 + $0xd0] sm:$0xff] %v896
  %901 = vst [vmem:[#allocation2 + $0xd8] sm:$0xff] %v897
  %902 = vrot.lane.b32.xlu0 %v740, 112
  %v903 = vpop.permute.xlu0 %902
  %904 = vrot.lane.b32.xlu0 %v741, 112
  %v905 = vpop.permute.xlu0 %904
  %906 = vrot.lane.b32.xlu0 %v742, 112
  %v907 = vpop.permute.xlu0 %906
  %908 = vrot.lane.b32.xlu0 %v743, 112
  %v909 = vpop.permute.xlu0 %908
  %v910 = vsel %vm221, %v903, %v905
  %v911 = vsel %vm221, %v905, %v907
  %v912 = vsel %vm221, %v907, %v909
  %v918 = vsel %vm221, %v909, %v903
  %v919 = vmul.f32 %v910, %v231
  %v920 = vmul.f32 %v911, %v232
  %v921 = vmul.f32 %v912, %v233
  %v922 = vmul.f32 %v918, %v234
  %923 = vst [vmem:[#allocation2 + $0xe0] sm:$0xff] %v919
  %924 = vst [vmem:[#allocation2 + $0xe8] sm:$0xff] %v920
  %925 = vst [vmem:[#allocation2 + $0xf0] sm:$0xff] %v921
  %926 = vst [vmem:[#allocation2 + $0xf8] sm:$0xff] %v922
  %927 = vrot.lane.b32.xlu0 %v740, 111
  %v928 = vpop.permute.xlu0 %927
  %929 = vrot.lane.b32.xlu0 %v741, 111
  %v930 = vpop.permute.xlu0 %929
  %931 = vrot.lane.b32.xlu0 %v742, 111
  %v932 = vpop.permute.xlu0 %931
  %933 = vrot.lane.b32.xlu0 %v743, 111
  %v934 = vpop.permute.xlu0 %933
  %v935 = vsel %vm251, %v928, %v930
  %v936 = vsel %vm251, %v930, %v932
  %v937 = vsel %vm251, %v932, %v934
  %v943 = vsel %vm251, %v934, %v928
  %v944 = vmul.f32 %v935, %v261
  %v945 = vmul.f32 %v936, %v262
  %v946 = vmul.f32 %v937, %v263
  %v947 = vmul.f32 %v943, %v264
  %948 = vst [vmem:[#allocation2 + $0x100] sm:$0xff] %v944
  %949 = vst [vmem:[#allocation2 + $0x108] sm:$0xff] %v945
  %950 = vst [vmem:[#allocation2 + $0x110] sm:$0xff] %v946
  %951 = vst [vmem:[#allocation2 + $0x118] sm:$0xff] %v947
  %s952 = scalar_lea.vmem %s1, 16
  %v953 = vld [vmem:[%s952] sm:$0xff]
  %v954 = vld [vmem:[#allocation2] sm:$0xff]
  %v955 = vld [vmem:[#allocation2 + $0x8] sm:$0xff]
  %v956 = vld [vmem:[#allocation2 + $0x10] sm:$0xff]
  %v957 = vld [vmem:[#allocation2 + $0x18] sm:$0xff]
  %v958 = vld [vmem:[#allocation2 + $0x20] sm:$0xff]
  %v959 = vld [vmem:[#allocation2 + $0x28] sm:$0xff]
  %v960 = vld [vmem:[#allocation2 + $0x30] sm:$0xff]
  %v961 = vld [vmem:[#allocation2 + $0x38] sm:$0xff]
  %v962 = vld [vmem:[#allocation2 + $0x40] sm:$0xff]
  %v963 = vld [vmem:[#allocation2 + $0x48] sm:$0xff]
  %v964 = vld [vmem:[#allocation2 + $0x50] sm:$0xff]
  %v965 = vld [vmem:[#allocation2 + $0x58] sm:$0xff]
  %v966 = vld [vmem:[#allocation2 + $0x60] sm:$0xff]
  %v967 = vld [vmem:[#allocation2 + $0x68] sm:$0xff]
  %v968 = vld [vmem:[#allocation2 + $0x70] sm:$0xff]
  %v969 = vld [vmem:[#allocation2 + $0x78] sm:$0xff]
  %v970 = vld [vmem:[#allocation2 + $0x80] sm:$0xff]
  %v971 = vld [vmem:[#allocation2 + $0x88] sm:$0xff]
  %v972 = vld [vmem:[#allocation2 + $0x90] sm:$0xff]
  %v973 = vld [vmem:[#allocation2 + $0x98] sm:$0xff]
  %v974 = vld [vmem:[#allocation2 + $0xa0] sm:$0xff]
  %v975 = vld [vmem:[#allocation2 + $0xa8] sm:$0xff]
  %v976 = vld [vmem:[#allocation2 + $0xb0] sm:$0xff]
  %v977 = vld [vmem:[#allocation2 + $0xb8] sm:$0xff]
  %v978 = vld [vmem:[#allocation2 + $0xc0] sm:$0xff]
  %v979 = vld [vmem:[#allocation2 + $0xc8] sm:$0xff]
  %v980 = vld [vmem:[#allocation2 + $0xd0] sm:$0xff]
  %v981 = vld [vmem:[#allocation2 + $0xd8] sm:$0xff]
  %v982 = vld [vmem:[#allocation2 + $0xe0] sm:$0xff]
  %v983 = vld [vmem:[#allocation2 + $0xe8] sm:$0xff]
  %v984 = vld [vmem:[#allocation2 + $0xf0] sm:$0xff]
  %v985 = vld [vmem:[#allocation2 + $0xf8] sm:$0xff]
  %v986 = vld [vmem:[#allocation2 + $0x100] sm:$0xff]
  %v987 = vld [vmem:[#allocation2 + $0x108] sm:$0xff]
  %v988 = vld [vmem:[#allocation2 + $0x110] sm:$0xff]
  %v989 = vld [vmem:[#allocation2 + $0x118] sm:$0xff]
  %s990 = scalar_lea.vmem %s2, 16
  %v991 = vld [vmem:[%s990] sm:$0xff]
  %993 = vset.pattern.permute.xlu0 0
  %994 = vperm.xlu0 %993, %v991
  %v995 = vpop.permute.xlu0 %994
  %v998 = vsel %vm316, %v953, 0
  %1000 = vmatpush.msra.mxu0 0.0
  %1001 = vmatpush.msra.mxu0 0.0
  %1002 = vmatpush.msra.mxu0 0.0
  %1003 = vmatpush.msra.mxu0 0.0
  %1004 = vmatpush.msra.mxu0 0.0
  %1005 = vmatpush.msra.mxu0 0.0
  %1006 = vmatpush.msra.mxu0 0.0
  %1007 = vmatpush.msra.mxu0 %v986
  %1008 = vmatpush.msra.mxu0 %v982
  %1009 = vmatpush.msra.mxu0 %v978
  %1010 = vmatpush.msra.mxu0 %v974
  %1011 = vmatpush.msra.mxu0 %v970
  %1012 = vmatpush.msra.mxu0 %v966
  %1013 = vmatpush.msra.mxu0 %v962
  %1014 = vmatpush.msra.mxu0 %v958
  %1015 = vmatpush.msra.mxu0 %v954
  %1016 = vmatmul.f32.gmra.mxu0 %v998
  %v1017 = vpop.f32.mrf.mxu0
  %v1018 = vadd.f32 %v995, %v1017
  %1019 = vdwg.mxu0
  %1020 = vmatpush.msra.mxu0 0.0
  %1021 = vmatpush.msra.mxu0 0.0
  %1022 = vmatpush.msra.mxu0 0.0
  %1023 = vmatpush.msra.mxu0 0.0
  %1024 = vmatpush.msra.mxu0 0.0
  %1025 = vmatpush.msra.mxu0 0.0
  %1026 = vmatpush.msra.mxu0 0.0
  %1027 = vmatpush.msra.mxu0 %v987
  %1028 = vmatpush.msra.mxu0 %v983
  %1029 = vmatpush.msra.mxu0 %v979
  %1030 = vmatpush.msra.mxu0 %v975
  %1031 = vmatpush.msra.mxu0 %v971
  %1032 = vmatpush.msra.mxu0 %v967
  %1033 = vmatpush.msra.mxu0 %v963
  %1034 = vmatpush.msra.mxu0 %v959
  %1035 = vmatpush.msra.mxu0 %v955
  %1036 = vmatmul.f32.gmra.mxu0 %v998
  %v1037 = vpop.f32.mrf.mxu0
  %v1038 = vadd.f32 %v995, %v1037
  %1039 = vdwg.mxu0
  %1040 = vmatpush.msra.mxu0 0.0
  %1041 = vmatpush.msra.mxu0 0.0
  %1042 = vmatpush.msra.mxu0 0.0
  %1043 = vmatpush.msra.mxu0 0.0
  %1044 = vmatpush.msra.mxu0 0.0
  %1045 = vmatpush.msra.mxu0 0.0
  %1046 = vmatpush.msra.mxu0 0.0
  %1047 = vmatpush.msra.mxu0 %v988
  %1048 = vmatpush.msra.mxu0 %v984
  %1049 = vmatpush.msra.mxu0 %v980
  %1050 = vmatpush.msra.mxu0 %v976
  %1051 = vmatpush.msra.mxu0 %v972
  %1052 = vmatpush.msra.mxu0 %v968
  %1053 = vmatpush.msra.mxu0 %v964
  %1054 = vmatpush.msra.mxu0 %v960
  %1055 = vmatpush.msra.mxu0 %v956
  %1056 = vmatmul.f32.gmra.mxu0 %v998
  %v1057 = vpop.f32.mrf.mxu0
  %v1058 = vadd.f32 %v995, %v1057
  %1059 = vdwg.mxu0
  %1060 = vmatpush.msra.mxu0 0.0
  %1061 = vmatpush.msra.mxu0 0.0
  %1062 = vmatpush.msra.mxu0 0.0
  %1063 = vmatpush.msra.mxu0 0.0
  %1064 = vmatpush.msra.mxu0 0.0
  %1065 = vmatpush.msra.mxu0 0.0
  %1066 = vmatpush.msra.mxu0 0.0
  %1067 = vmatpush.msra.mxu0 %v989
  %1068 = vmatpush.msra.mxu0 %v985
  %1069 = vmatpush.msra.mxu0 %v981
  %1070 = vmatpush.msra.mxu0 %v977
  %1071 = vmatpush.msra.mxu0 %v973
  %1072 = vmatpush.msra.mxu0 %v969
  %1073 = vmatpush.msra.mxu0 %v965
  %1074 = vmatpush.msra.mxu0 %v961
  %1075 = vmatpush.msra.mxu0 %v957
  %1076 = vmatmul.f32.gmra.mxu0 %v998
  %v1077 = vpop.f32.mrf.mxu0
  %v1078 = vadd.f32 %v995, %v1077
  %1079 = vdwg.mxu0
  %v1080 = vmax.f32 %v1018, 0.0
  %v1081 = vmax.f32 %v1038, 0.0
  %v1082 = vmax.f32 %v1058, 0.0
  %v1083 = vmax.f32 %v1078, 0.0
  %1084 = vst [vmem:[%s4] sm:$0xff] %v1080
  %1085 = vst [vmem:[%s4 + $0x8] sm:$0xff] %v1081
  %1086 = vst [vmem:[%s4 + $0x10] sm:$0xff] %v1082
  %1087 = vst [vmem:[%s4 + $0x18] sm:$0xff] %v1083
  // Predicated region
  $region18: #{backbone_forward.1} parent=0 // pred_check
    _
  $region19: #{backbone_forward.1} parent=0 // pred_check_branch
    %1089 = sbr.rel (0) target = $region21
  $region20: #{backbone_forward.1} parent=0 // pred_region
    _
  $region21: #{backbone_forward.1} parent=0 // pred_fallthru
    _
  // Predicated region
  $region22: #{backbone_forward.1} parent=0 // pred_check
    _
  $region23: #{backbone_forward.1} parent=0 // pred_check_branch
    %1091 = sbr.rel (0) target = $region25
  $region24: #{backbone_forward.1} parent=0 // pred_region
    _
  $region25: #{backbone_forward.1} parent=0 // pred_fallthru
    _

</llo_original>
